<compile_context>
chip_gen: v5e
topology: v5e:2x2
jax: 0.10.0
libtpu: 0.0.40
codegen_flags: <defaults>
</compile_context>

<pallas_src>
import jax
import jax.numpy as jnp
from jax import lax
from jax.experimental import pallas as pl
from jax.experimental.pallas import tpu as pltpu

N_EMBD = 64
N_HEAD = 8
LN_EPS = 1e-5
NEG_BIG = -1e30


def _layer_norm(h, gamma, beta):
    mu = jnp.mean(h, axis=-1, keepdims=True)
    var = jnp.mean(jnp.square(h - mu), axis=-1, keepdims=True)
    return (h - mu) * lax.rsqrt(var + LN_EPS) * gamma + beta


def _make_block_kernel(B, T, C, n_head):
    hs = C // n_head
    BT = B * T

    def kernel(x_ref, bias_ref, ln1g_ref, ln1b_ref, wqkv_ref,
               wp_ref, bp_ref, ln2g_ref, ln2b_ref,
               w1_ref, b1_ref, w2_ref, b2_ref, o_ref):
        x = x_ref[...].astype(jnp.float32)                       # (B*T, C)

        # ---- LayerNorm 1 + fused QKV projection (single MXU push) ----
        h1 = _layer_norm(x, ln1g_ref[...], ln1b_ref[...])
        qkv = jnp.dot(h1, wqkv_ref[...],
                      preferred_element_type=jnp.float32)        # (B*T, 3C)

        # ---- pack all (head, batch) attention problems along sublanes ----
        # packed row = h*(B*T) + b*T + t  (blocks of T rows per (head, batch))
        def pack(col0):
            return jnp.concatenate(
                [qkv[:, col0 + h * hs: col0 + (h + 1) * hs]
                 for h in range(n_head)], axis=0)                # (n_head*B*T, hs)

        q_p = pack(0)          # scale already folded into the Q weight columns
        k_p = pack(C)
        v_p = pack(2 * C)

        # ---- packed attention: one scores matmul, one softmax, one PV ----
        s = lax.dot_general(q_p, k_p, (((1,), (1,)), ((), ())),
                            preferred_element_type=jnp.float32)  # (P, P)
        s = s + bias_ref[...]              # block-diagonal causal additive mask
        s = s - jnp.max(s, axis=-1, keepdims=True)
        p = jnp.exp(s)
        p = p * pl.reciprocal(jnp.sum(p, axis=-1, keepdims=True), approx=True)
        att_p = jnp.dot(p, v_p, preferred_element_type=jnp.float32)   # (P, hs)

        # ---- output projection, folded over head blocks (no lane concat) ----
        sa = jnp.dot(att_p[0:BT, :], wp_ref[0:hs, :],
                     preferred_element_type=jnp.float32)
        for h in range(1, n_head):
            sa = sa + jnp.dot(att_p[h * BT:(h + 1) * BT, :],
                              wp_ref[h * hs:(h + 1) * hs, :],
                              preferred_element_type=jnp.float32)
        sa = sa + bp_ref[...]
        x1 = x + sa

        # ---- LayerNorm 2 + feed-forward + second residual ----
        h2 = _layer_norm(x1, ln2g_ref[...], ln2b_ref[...])
        f = jnp.dot(h2, w1_ref[...],
                    preferred_element_type=jnp.float32) + b1_ref[...]
        f = jnp.maximum(f, 0.0)
        f = jnp.dot(f, w2_ref[...],
                    preferred_element_type=jnp.float32) + b2_ref[...]
        o_ref[...] = (x1 + f).astype(o_ref.dtype)

    return kernel


def block_forward(x, params, n_head=N_HEAD):
    """x: (B, T, C) float32; params: dict of Block weights -> (B, T, C)."""
    B, T, C = x.shape
    BT = B * T
    P = n_head * BT
    scale = C ** -0.5      # matches the PyTorch module: n_embd**-0.5 (not hs**-0.5)

    # Fused QKV weight with the attention scale folded into the Q columns.
    wqkv = jnp.concatenate(
        [params["wq"] * scale, params["wk"], params["wv"]], axis=1)     # (C, 3C)

    # Block-diagonal causal additive bias over packed (head, batch, t) rows:
    # key j is visible to query i iff same (head, batch) block and t_j <= t_i.
    idx = jnp.arange(P)
    blk = idx // T
    tpos = idx % T
    keep = (blk[:, None] == blk[None, :]) & (tpos[None, :] <= tpos[:, None])
    attn_bias = jnp.where(keep, 0.0, NEG_BIG).astype(jnp.float32)       # (P, P)

    kernel = _make_block_kernel(B, T, C, n_head)
    args = (
        x.reshape(BT, C),
        attn_bias,
        params["ln1_g"].reshape(1, C), params["ln1_b"].reshape(1, C),
        wqkv,
        params["w_proj"], params["b_proj"].reshape(1, C),
        params["ln2_g"].reshape(1, C), params["ln2_b"].reshape(1, C),
        params["w1"], params["b1"].reshape(1, 4 * C),
        params["w2"], params["b2"].reshape(1, C),
    )
    out = pl.pallas_call(
        kernel,
        out_shape=jax.ShapeDtypeStruct((BT, C), x.dtype),
        # Whole problem (~0.4 MiB of operands + intermediates) fits in one
        # invocation; 8 MiB leaves ample headroom and stays far under v7x's
        # 64 MiB physical VMEM.  Re-derive when scaling B/T (flash-tile KV).
        compiler_params=pltpu.CompilerParams(vmem_limit_bytes=8 * 1024 * 1024),
    )(*args)
    return out.reshape(B, T, C)


def block_reference(x, params, n_head=N_HEAD):
    """Pure-JAX reference mirroring the PyTorch Block forward (eval mode)."""
    B, T, C = x.shape
    hs = C // n_head

    def ln(h, g, b):
        mu = h.mean(-1, keepdims=True)
        var = ((h - mu) ** 2).mean(-1, keepdims=True)
        return (h - mu) / jnp.sqrt(var + LN_EPS) * g + b

    h1 = ln(x, params["ln1_g"], params["ln1_b"])
    q = h1 @ params["wq"]
    k = h1 @ params["wk"]
    v = h1 @ params["wv"]
    qh = q.reshape(B, T, n_head, hs).transpose(0, 2, 1, 3)
    kh = k.reshape(B, T, n_head, hs).transpose(0, 2, 1, 3)
    vh = v.reshape(B, T, n_head, hs).transpose(0, 2, 1, 3)
    wei = jnp.einsum("bhqd,bhkd->bhqk", qh, kh) * (C ** -0.5)
    mask = jnp.tril(jnp.ones((T, T), dtype=bool))
    wei = jnp.where(mask, wei, -jnp.inf)
    wei = jax.nn.softmax(wei, axis=-1)
    att = jnp.einsum("bhqk,bhkd->bhqd", wei, vh)
    att = att.transpose(0, 2, 1, 3).reshape(B, T, C)
    sa = att @ params["w_proj"] + params["b_proj"]
    x1 = x + sa
    h2 = ln(x1, params["ln2_g"], params["ln2_b"])
    f = jax.nn.relu(h2 @ params["w1"] + params["b1"])
    f = f @ params["w2"] + params["b2"]
    return x1 + f


if __name__ == "__main__":
    key = jax.random.PRNGKey(0)
    B, T, C = 2, 8, N_EMBD
    keys = jax.random.split(key, 16)

    def linear_w(k, fan_in, fan_out):
        bound = 1.0 / (fan_in ** 0.5)
        return jax.random.uniform(k, (fan_in, fan_out), jnp.float32, -bound, bound)

    def linear_b(k, fan_in, fan_out):
        bound = 1.0 / (fan_in ** 0.5)
        return jax.random.uniform(k, (fan_out,), jnp.float32, -bound, bound)

    params = {
        "ln1_g": jax.random.uniform(keys[0], (C,), jnp.float32, 0.5, 1.5),
        "ln1_b": jax.random.uniform(keys[1], (C,), jnp.float32, -0.5, 0.5),
        "wq": linear_w(keys[2], C, C),
        "wk": linear_w(keys[3], C, C),
        "wv": linear_w(keys[4], C, C),
        "w_proj": linear_w(keys[5], C, C),
        "b_proj": linear_b(keys[6], C, C),
        "ln2_g": jax.random.uniform(keys[7], (C,), jnp.float32, 0.5, 1.5),
        "ln2_b": jax.random.uniform(keys[8], (C,), jnp.float32, -0.5, 0.5),
        "w1": linear_w(keys[9], C, 4 * C),
        "b1": linear_b(keys[10], C, 4 * C),
        "w2": linear_w(keys[11], 4 * C, C),
        "b2": linear_b(keys[12], 4 * C, C),
    }
    x = jax.random.normal(keys[13], (B, T, C), dtype=jnp.float32)

    out = jax.block_until_ready(block_forward(x, params))
    ref = block_reference(x, params)

    assert out.shape == (B, T, C)
    # Tolerance relaxed to 1e-2 because the softmax denominator uses the
    # approximate EUP reciprocal (pl.reciprocal(..., approx=True)).
    assert jnp.allclose(out, ref, atol=1e-2, rtol=1e-2), (
        f"mismatch vs reference: max abs diff = {jnp.max(jnp.abs(out - ref))}")
    print("KERNEL_OK")
</pallas_src>

<mosaic_0001>
module attributes {stable_mosaic.version = 11 : i64} {
  func.func @kernel(%arg0: memref<16x64xf32, #tpu.memory_space<vmem>>, %arg1: memref<128x128xf32, #tpu.memory_space<vmem>>, %arg2: memref<1x64xf32, #tpu.memory_space<vmem>>, %arg3: memref<1x64xf32, #tpu.memory_space<vmem>>, %arg4: memref<64x192xf32, #tpu.memory_space<vmem>>, %arg5: memref<64x64xf32, #tpu.memory_space<vmem>>, %arg6: memref<1x64xf32, #tpu.memory_space<vmem>>, %arg7: memref<1x64xf32, #tpu.memory_space<vmem>>, %arg8: memref<1x64xf32, #tpu.memory_space<vmem>>, %arg9: memref<64x256xf32, #tpu.memory_space<vmem>>, %arg10: memref<1x256xf32, #tpu.memory_space<vmem>>, %arg11: memref<256x64xf32, #tpu.memory_space<vmem>>, %arg12: memref<1x64xf32, #tpu.memory_space<vmem>>, %arg13: memref<16x64xf32, #tpu.memory_space<vmem>>) attributes {dimension_semantics = [], scalar_prefetch = 0 : i64, scratch_operands = 0 : i64, tpu.core_type = #tpu.core_type<tc>} {
    %c0 = arith.constant 0 : index
    %c0_0 = arith.constant 0 : index
    %0 = vector.load %arg0[%c0, %c0_0] : memref<16x64xf32, #tpu.memory_space<vmem>>, vector<16x64xf32>
    %c0_1 = arith.constant 0 : index
    %c0_2 = arith.constant 0 : index
    %1 = vector.load %arg2[%c0_1, %c0_2] : memref<1x64xf32, #tpu.memory_space<vmem>>, vector<1x64xf32>
    %c0_3 = arith.constant 0 : index
    %c0_4 = arith.constant 0 : index
    %2 = vector.load %arg3[%c0_3, %c0_4] : memref<1x64xf32, #tpu.memory_space<vmem>>, vector<1x64xf32>
    %cst = arith.constant dense<0.000000e+00> : vector<16xf32>
    %3 = vector.multi_reduction <add>, %0, %cst [1] : vector<16x64xf32> to vector<16xf32>
    %4 = vector.shape_cast %3 : vector<16xf32> to vector<16x1xf32>
    %cst_5 = arith.constant 6.400000e+01 : f32
    %5 = vector.broadcast %cst_5 : f32 to vector<16x1xf32>
    %6 = arith.divf %4, %5 : vector<16x1xf32>
    %7 = vector.broadcast %6 : vector<16x1xf32> to vector<16x64xf32>
    %8 = arith.subf %0, %7 : vector<16x64xf32>
    %9 = arith.mulf %8, %8 : vector<16x64xf32>
    %cst_6 = arith.constant dense<0.000000e+00> : vector<16xf32>
    %10 = vector.multi_reduction <add>, %9, %cst_6 [1] : vector<16x64xf32> to vector<16xf32>
    %11 = vector.shape_cast %10 : vector<16xf32> to vector<16x1xf32>
    %cst_7 = arith.constant 6.400000e+01 : f32
    %12 = vector.broadcast %cst_7 : f32 to vector<16x1xf32>
    %13 = arith.divf %11, %12 : vector<16x1xf32>
    %14 = vector.broadcast %6 : vector<16x1xf32> to vector<16x64xf32>
    %15 = arith.subf %0, %14 : vector<16x64xf32>
    %cst_8 = arith.constant 9.99999974E-6 : f32
    %16 = vector.broadcast %cst_8 : f32 to vector<16x1xf32>
    %17 = arith.addf %13, %16 : vector<16x1xf32>
    %18 = math.rsqrt %17 : vector<16x1xf32>
    %19 = vector.broadcast %18 : vector<16x1xf32> to vector<16x64xf32>
    %20 = arith.mulf %15, %19 : vector<16x64xf32>
    %21 = vector.broadcast %1 : vector<1x64xf32> to vector<16x64xf32>
    %22 = arith.mulf %20, %21 : vector<16x64xf32>
    %23 = vector.broadcast %2 : vector<1x64xf32> to vector<16x64xf32>
    %24 = arith.addf %22, %23 : vector<16x64xf32>
    %c0_9 = arith.constant 0 : index
    %c0_10 = arith.constant 0 : index
    %25 = vector.load %arg4[%c0_9, %c0_10] : memref<64x192xf32, #tpu.memory_space<vmem>>, vector<64x192xf32>
    %cst_11 = arith.constant dense<0.000000e+00> : vector<16x192xf32>
    %26 = tpu.matmul %24, %25, %cst_11 {dimension_numbers = #tpu.dot_dimension_numbers<[1], [0], [0], [1], [0, 0, 1, 1], [], []>} : vector<16x64xf32>, vector<64x192xf32>, vector<16x192xf32> -> vector<16x192xf32>
    %27 = vector.extract_strided_slice %26 {offsets = [0, 0], sizes = [16, 8], strides = [1, 1]} : vector<16x192xf32> to vector<16x8xf32>
    %28 = vector.extract_strided_slice %26 {offsets = [0, 8], sizes = [16, 8], strides = [1, 1]} : vector<16x192xf32> to vector<16x8xf32>
    %29 = vector.extract_strided_slice %26 {offsets = [0, 16], sizes = [16, 8], strides = [1, 1]} : vector<16x192xf32> to vector<16x8xf32>
    %30 = vector.extract_strided_slice %26 {offsets = [0, 24], sizes = [16, 8], strides = [1, 1]} : vector<16x192xf32> to vector<16x8xf32>
    %31 = vector.extract_strided_slice %26 {offsets = [0, 32], sizes = [16, 8], strides = [1, 1]} : vector<16x192xf32> to vector<16x8xf32>
    %32 = vector.extract_strided_slice %26 {offsets = [0, 40], sizes = [16, 8], strides = [1, 1]} : vector<16x192xf32> to vector<16x8xf32>
    %33 = vector.extract_strided_slice %26 {offsets = [0, 48], sizes = [16, 8], strides = [1, 1]} : vector<16x192xf32> to vector<16x8xf32>
    %34 = vector.extract_strided_slice %26 {offsets = [0, 56], sizes = [16, 8], strides = [1, 1]} : vector<16x192xf32> to vector<16x8xf32>
    %35 = tpu.concatenate %27, %28, %29, %30, %31, %32, %33, %34 in 0 : vector<16x8xf32>, vector<16x8xf32>, vector<16x8xf32>, vector<16x8xf32>, vector<16x8xf32>, vector<16x8xf32>, vector<16x8xf32>, vector<16x8xf32> -> vector<128x8xf32>
    %36 = vector.extract_strided_slice %26 {offsets = [0, 64], sizes = [16, 8], strides = [1, 1]} : vector<16x192xf32> to vector<16x8xf32>
    %37 = vector.extract_strided_slice %26 {offsets = [0, 72], sizes = [16, 8], strides = [1, 1]} : vector<16x192xf32> to vector<16x8xf32>
    %38 = vector.extract_strided_slice %26 {offsets = [0, 80], sizes = [16, 8], strides = [1, 1]} : vector<16x192xf32> to vector<16x8xf32>
    %39 = vector.extract_strided_slice %26 {offsets = [0, 88], sizes = [16, 8], strides = [1, 1]} : vector<16x192xf32> to vector<16x8xf32>
    %40 = vector.extract_strided_slice %26 {offsets = [0, 96], sizes = [16, 8], strides = [1, 1]} : vector<16x192xf32> to vector<16x8xf32>
    %41 = vector.extract_strided_slice %26 {offsets = [0, 104], sizes = [16, 8], strides = [1, 1]} : vector<16x192xf32> to vector<16x8xf32>
    %42 = vector.extract_strided_slice %26 {offsets = [0, 112], sizes = [16, 8], strides = [1, 1]} : vector<16x192xf32> to vector<16x8xf32>
    %43 = vector.extract_strided_slice %26 {offsets = [0, 120], sizes = [16, 8], strides = [1, 1]} : vector<16x192xf32> to vector<16x8xf32>
    %44 = tpu.concatenate %36, %37, %38, %39, %40, %41, %42, %43 in 0 : vector<16x8xf32>, vector<16x8xf32>, vector<16x8xf32>, vector<16x8xf32>, vector<16x8xf32>, vector<16x8xf32>, vector<16x8xf32>, vector<16x8xf32> -> vector<128x8xf32>
    %45 = vector.extract_strided_slice %26 {offsets = [0, 128], sizes = [16, 8], strides = [1, 1]} : vector<16x192xf32> to vector<16x8xf32>
    %46 = vector.extract_strided_slice %26 {offsets = [0, 136], sizes = [16, 8], strides = [1, 1]} : vector<16x192xf32> to vector<16x8xf32>
    %47 = vector.extract_strided_slice %26 {offsets = [0, 144], sizes = [16, 8], strides = [1, 1]} : vector<16x192xf32> to vector<16x8xf32>
    %48 = vector.extract_strided_slice %26 {offsets = [0, 152], sizes = [16, 8], strides = [1, 1]} : vector<16x192xf32> to vector<16x8xf32>
    %49 = vector.extract_strided_slice %26 {offsets = [0, 160], sizes = [16, 8], strides = [1, 1]} : vector<16x192xf32> to vector<16x8xf32>
    %50 = vector.extract_strided_slice %26 {offsets = [0, 168], sizes = [16, 8], strides = [1, 1]} : vector<16x192xf32> to vector<16x8xf32>
    %51 = vector.extract_strided_slice %26 {offsets = [0, 176], sizes = [16, 8], strides = [1, 1]} : vector<16x192xf32> to vector<16x8xf32>
    %52 = vector.extract_strided_slice %26 {offsets = [0, 184], sizes = [16, 8], strides = [1, 1]} : vector<16x192xf32> to vector<16x8xf32>
    %53 = tpu.concatenate %45, %46, %47, %48, %49, %50, %51, %52 in 0 : vector<16x8xf32>, vector<16x8xf32>, vector<16x8xf32>, vector<16x8xf32>, vector<16x8xf32>, vector<16x8xf32>, vector<16x8xf32>, vector<16x8xf32> -> vector<128x8xf32>
    %cst_12 = arith.constant dense<0.000000e+00> : vector<128x128xf32>
    %54 = tpu.matmul %35, %44, %cst_12 {dimension_numbers = #tpu.dot_dimension_numbers<[1], [1], [0], [0], [0, 0, 1, 0], [], []>} : vector<128x8xf32>, vector<128x8xf32>, vector<128x128xf32> -> vector<128x128xf32>
    %c0_13 = arith.constant 0 : index
    %c0_14 = arith.constant 0 : index
    %55 = vector.load %arg1[%c0_13, %c0_14] : memref<128x128xf32, #tpu.memory_space<vmem>>, vector<128x128xf32>
    %56 = arith.addf %54, %55 : vector<128x128xf32>
    %cst_15 = arith.constant dense<0xFF800000> : vector<128xf32>
    %57 = vector.multi_reduction <maximumf>, %56, %cst_15 [1] : vector<128x128xf32> to vector<128xf32>
    %58 = vector.shape_cast %57 : vector<128xf32> to vector<128x1xf32>
    %59 = vector.broadcast %58 : vector<128x1xf32> to vector<128x128xf32>
    %60 = arith.subf %56, %59 : vector<128x128xf32>
    %61 = math.exp %60 : vector<128x128xf32>
    %cst_16 = arith.constant dense<0.000000e+00> : vector<128xf32>
    %62 = vector.multi_reduction <add>, %61, %cst_16 [1] : vector<128x128xf32> to vector<128xf32>
    %63 = vector.shape_cast %62 : vector<128xf32> to vector<128x1xf32>
    %64 = tpu.reciprocal %63 {approx = true} : vector<128x1xf32> -> vector<128x1xf32>
    %65 = vector.broadcast %64 : vector<128x1xf32> to vector<128x128xf32>
    %66 = arith.mulf %61, %65 : vector<128x128xf32>
    %cst_17 = arith.constant dense<0.000000e+00> : vector<128x8xf32>
    %67 = tpu.matmul %66, %53, %cst_17 {dimension_numbers = #tpu.dot_dimension_numbers<[1], [0], [0], [1], [0, 0, 1, 1], [], []>} : vector<128x128xf32>, vector<128x8xf32>, vector<128x8xf32> -> vector<128x8xf32>
    %68 = vector.extract_strided_slice %67 {offsets = [0, 0], sizes = [16, 8], strides = [1, 1]} : vector<128x8xf32> to vector<16x8xf32>
    %c0_18 = arith.constant 0 : index
    %c0_19 = arith.constant 0 : index
    %69 = vector.load %arg5[%c0_18, %c0_19] : memref<64x64xf32, #tpu.memory_space<vmem>>, vector<8x64xf32>
    %cst_20 = arith.constant dense<0.000000e+00> : vector<16x64xf32>
    %70 = tpu.matmul %68, %69, %cst_20 {dimension_numbers = #tpu.dot_dimension_numbers<[1], [0], [0], [1], [0, 0, 1, 1], [], []>} : vector<16x8xf32>, vector<8x64xf32>, vector<16x64xf32> -> vector<16x64xf32>
    %71 = vector.extract_strided_slice %67 {offsets = [16, 0], sizes = [16, 8], strides = [1, 1]} : vector<128x8xf32> to vector<16x8xf32>
    %c8 = arith.constant 8 : index
    %c0_21 = arith.constant 0 : index
    %72 = vector.load %arg5[%c8, %c0_21] : memref<64x64xf32, #tpu.memory_space<vmem>>, vector<8x64xf32>
    %cst_22 = arith.constant dense<0.000000e+00> : vector<16x64xf32>
    %73 = tpu.matmul %71, %72, %cst_22 {dimension_numbers = #tpu.dot_dimension_numbers<[1], [0], [0], [1], [0, 0, 1, 1], [], []>} : vector<16x8xf32>, vector<8x64xf32>, vector<16x64xf32> -> vector<16x64xf32>
    %74 = arith.addf %70, %73 : vector<16x64xf32>
    %75 = vector.extract_strided_slice %67 {offsets = [32, 0], sizes = [16, 8], strides = [1, 1]} : vector<128x8xf32> to vector<16x8xf32>
    %c16 = arith.constant 16 : index
    %c0_23 = arith.constant 0 : index
    %76 = vector.load %arg5[%c16, %c0_23] : memref<64x64xf32, #tpu.memory_space<vmem>>, vector<8x64xf32>
    %cst_24 = arith.constant dense<0.000000e+00> : vector<16x64xf32>
    %77 = tpu.matmul %75, %76, %cst_24 {dimension_numbers = #tpu.dot_dimension_numbers<[1], [0], [0], [1], [0, 0, 1, 1], [], []>} : vector<16x8xf32>, vector<8x64xf32>, vector<16x64xf32> -> vector<16x64xf32>
    %78 = arith.addf %74, %77 : vector<16x64xf32>
    %79 = vector.extract_strided_slice %67 {offsets = [48, 0], sizes = [16, 8], strides = [1, 1]} : vector<128x8xf32> to vector<16x8xf32>
    %c24 = arith.constant 24 : index
    %c0_25 = arith.constant 0 : index
    %80 = vector.load %arg5[%c24, %c0_25] : memref<64x64xf32, #tpu.memory_space<vmem>>, vector<8x64xf32>
    %cst_26 = arith.constant dense<0.000000e+00> : vector<16x64xf32>
    %81 = tpu.matmul %79, %80, %cst_26 {dimension_numbers = #tpu.dot_dimension_numbers<[1], [0], [0], [1], [0, 0, 1, 1], [], []>} : vector<16x8xf32>, vector<8x64xf32>, vector<16x64xf32> -> vector<16x64xf32>
    %82 = arith.addf %78, %81 : vector<16x64xf32>
    %83 = vector.extract_strided_slice %67 {offsets = [64, 0], sizes = [16, 8], strides = [1, 1]} : vector<128x8xf32> to vector<16x8xf32>
    %c32 = arith.constant 32 : index
    %c0_27 = arith.constant 0 : index
    %84 = vector.load %arg5[%c32, %c0_27] : memref<64x64xf32, #tpu.memory_space<vmem>>, vector<8x64xf32>
    %cst_28 = arith.constant dense<0.000000e+00> : vector<16x64xf32>
    %85 = tpu.matmul %83, %84, %cst_28 {dimension_numbers = #tpu.dot_dimension_numbers<[1], [0], [0], [1], [0, 0, 1, 1], [], []>} : vector<16x8xf32>, vector<8x64xf32>, vector<16x64xf32> -> vector<16x64xf32>
    %86 = arith.addf %82, %85 : vector<16x64xf32>
    %87 = vector.extract_strided_slice %67 {offsets = [80, 0], sizes = [16, 8], strides = [1, 1]} : vector<128x8xf32> to vector<16x8xf32>
    %c40 = arith.constant 40 : index
    %c0_29 = arith.constant 0 : index
    %88 = vector.load %arg5[%c40, %c0_29] : memref<64x64xf32, #tpu.memory_space<vmem>>, vector<8x64xf32>
    %cst_30 = arith.constant dense<0.000000e+00> : vector<16x64xf32>
    %89 = tpu.matmul %87, %88, %cst_30 {dimension_numbers = #tpu.dot_dimension_numbers<[1], [0], [0], [1], [0, 0, 1, 1], [], []>} : vector<16x8xf32>, vector<8x64xf32>, vector<16x64xf32> -> vector<16x64xf32>
    %90 = arith.addf %86, %89 : vector<16x64xf32>
    %91 = vector.extract_strided_slice %67 {offsets = [96, 0], sizes = [16, 8], strides = [1, 1]} : vector<128x8xf32> to vector<16x8xf32>
    %c48 = arith.constant 48 : index
    %c0_31 = arith.constant 0 : index
    %92 = vector.load %arg5[%c48, %c0_31] : memref<64x64xf32, #tpu.memory_space<vmem>>, vector<8x64xf32>
    %cst_32 = arith.constant dense<0.000000e+00> : vector<16x64xf32>
    %93 = tpu.matmul %91, %92, %cst_32 {dimension_numbers = #tpu.dot_dimension_numbers<[1], [0], [0], [1], [0, 0, 1, 1], [], []>} : vector<16x8xf32>, vector<8x64xf32>, vector<16x64xf32> -> vector<16x64xf32>
    %94 = arith.addf %90, %93 : vector<16x64xf32>
    %95 = vector.extract_strided_slice %67 {offsets = [112, 0], sizes = [16, 8], strides = [1, 1]} : vector<128x8xf32> to vector<16x8xf32>
    %c56 = arith.constant 56 : index
    %c0_33 = arith.constant 0 : index
    %96 = vector.load %arg5[%c56, %c0_33] : memref<64x64xf32, #tpu.memory_space<vmem>>, vector<8x64xf32>
    %cst_34 = arith.constant dense<0.000000e+00> : vector<16x64xf32>
    %97 = tpu.matmul %95, %96, %cst_34 {dimension_numbers = #tpu.dot_dimension_numbers<[1], [0], [0], [1], [0, 0, 1, 1], [], []>} : vector<16x8xf32>, vector<8x64xf32>, vector<16x64xf32> -> vector<16x64xf32>
    %98 = arith.addf %94, %97 : vector<16x64xf32>
    %c0_35 = arith.constant 0 : index
    %c0_36 = arith.constant 0 : index
    %99 = vector.load %arg6[%c0_35, %c0_36] : memref<1x64xf32, #tpu.memory_space<vmem>>, vector<1x64xf32>
    %100 = vector.broadcast %99 : vector<1x64xf32> to vector<16x64xf32>
    %101 = arith.addf %98, %100 : vector<16x64xf32>
    %102 = arith.addf %0, %101 : vector<16x64xf32>
    %c0_37 = arith.constant 0 : index
    %c0_38 = arith.constant 0 : index
    %103 = vector.load %arg7[%c0_37, %c0_38] : memref<1x64xf32, #tpu.memory_space<vmem>>, vector<1x64xf32>
    %c0_39 = arith.constant 0 : index
    %c0_40 = arith.constant 0 : index
    %104 = vector.load %arg8[%c0_39, %c0_40] : memref<1x64xf32, #tpu.memory_space<vmem>>, vector<1x64xf32>
    %cst_41 = arith.constant dense<0.000000e+00> : vector<16xf32>
    %105 = vector.multi_reduction <add>, %102, %cst_41 [1] : vector<16x64xf32> to vector<16xf32>
    %106 = vector.shape_cast %105 : vector<16xf32> to vector<16x1xf32>
    %cst_42 = arith.constant 6.400000e+01 : f32
    %107 = vector.broadcast %cst_42 : f32 to vector<16x1xf32>
    %108 = arith.divf %106, %107 : vector<16x1xf32>
    %109 = vector.broadcast %108 : vector<16x1xf32> to vector<16x64xf32>
    %110 = arith.subf %102, %109 : vector<16x64xf32>
    %111 = arith.mulf %110, %110 : vector<16x64xf32>
    %cst_43 = arith.constant dense<0.000000e+00> : vector<16xf32>
    %112 = vector.multi_reduction <add>, %111, %cst_43 [1] : vector<16x64xf32> to vector<16xf32>
    %113 = vector.shape_cast %112 : vector<16xf32> to vector<16x1xf32>
    %cst_44 = arith.constant 6.400000e+01 : f32
    %114 = vector.broadcast %cst_44 : f32 to vector<16x1xf32>
    %115 = arith.divf %113, %114 : vector<16x1xf32>
    %116 = vector.broadcast %108 : vector<16x1xf32> to vector<16x64xf32>
    %117 = arith.subf %102, %116 : vector<16x64xf32>
    %cst_45 = arith.constant 9.99999974E-6 : f32
    %118 = vector.broadcast %cst_45 : f32 to vector<16x1xf32>
    %119 = arith.addf %115, %118 : vector<16x1xf32>
    %120 = math.rsqrt %119 : vector<16x1xf32>
    %121 = vector.broadcast %120 : vector<16x1xf32> to vector<16x64xf32>
    %122 = arith.mulf %117, %121 : vector<16x64xf32>
    %123 = vector.broadcast %103 : vector<1x64xf32> to vector<16x64xf32>
    %124 = arith.mulf %122, %123 : vector<16x64xf32>
    %125 = vector.broadcast %104 : vector<1x64xf32> to vector<16x64xf32>
    %126 = arith.addf %124, %125 : vector<16x64xf32>
    %c0_46 = arith.constant 0 : index
    %c0_47 = arith.constant 0 : index
    %127 = vector.load %arg9[%c0_46, %c0_47] : memref<64x256xf32, #tpu.memory_space<vmem>>, vector<64x256xf32>
    %cst_48 = arith.constant dense<0.000000e+00> : vector<16x256xf32>
    %128 = tpu.matmul %126, %127, %cst_48 {dimension_numbers = #tpu.dot_dimension_numbers<[1], [0], [0], [1], [0, 0, 1, 1], [], []>} : vector<16x64xf32>, vector<64x256xf32>, vector<16x256xf32> -> vector<16x256xf32>
    %c0_49 = arith.constant 0 : index
    %c0_50 = arith.constant 0 : index
    %129 = vector.load %arg10[%c0_49, %c0_50] : memref<1x256xf32, #tpu.memory_space<vmem>>, vector<1x256xf32>
    %130 = vector.broadcast %129 : vector<1x256xf32> to vector<16x256xf32>
    %131 = arith.addf %128, %130 : vector<16x256xf32>
    %cst_51 = arith.constant 0.000000e+00 : f32
    %132 = vector.broadcast %cst_51 : f32 to vector<16x256xf32>
    %133 = arith.maximumf %131, %132 : vector<16x256xf32>
    %c0_52 = arith.constant 0 : index
    %c0_53 = arith.constant 0 : index
    %134 = vector.load %arg11[%c0_52, %c0_53] : memref<256x64xf32, #tpu.memory_space<vmem>>, vector<256x64xf32>
    %cst_54 = arith.constant dense<0.000000e+00> : vector<16x64xf32>
    %135 = tpu.matmul %133, %134, %cst_54 {dimension_numbers = #tpu.dot_dimension_numbers<[1], [0], [0], [1], [0, 0, 1, 1], [], []>} : vector<16x256xf32>, vector<256x64xf32>, vector<16x64xf32> -> vector<16x64xf32>
    %c0_55 = arith.constant 0 : index
    %c0_56 = arith.constant 0 : index
    %136 = vector.load %arg12[%c0_55, %c0_56] : memref<1x64xf32, #tpu.memory_space<vmem>>, vector<1x64xf32>
    %137 = vector.broadcast %136 : vector<1x64xf32> to vector<16x64xf32>
    %138 = arith.addf %135, %137 : vector<16x64xf32>
    %139 = arith.addf %102, %138 : vector<16x64xf32>
    %c0_57 = arith.constant 0 : index
    %c0_58 = arith.constant 0 : index
    %140 = vector.load %arg13[%c0_57, %c0_58] : memref<16x64xf32, #tpu.memory_space<vmem>>, vector<16x64xf32>
    tpu.vector_store %arg13[%c0_57, %c0_58], %139 {strides = array<i32>} : memref<16x64xf32, #tpu.memory_space<vmem>>, vector<16x64xf32>,
    return
  }
}

</mosaic_0001>

<llo_original>
// kernel: tpu_custom_call.1
$region0: #{tpu_custom_call.1}
  #allocation0 [shape = 'u32[]', space=smem, size = 0x4, offset = 0x4, fixed_abs, tag = 'smem constant byte address 0x4 - core index']
  #allocation1 [shape = 'u32[72,128]{1,0:T(1,128)}', space=vmem, size = 0x9000, scoped, tag = 'internal scratch']
  %s0 = inlined_call_operand.hbm [shape: f32[16,64], index: 0, kind: input, shape index: {}]
  %s1 = inlined_call_operand.vmem [shape: f32[128,128], index: 1, kind: input, shape index: {}]
  %s2 = inlined_call_operand.hbm [shape: f32[1,64], index: 2, kind: input, shape index: {}]
  %s3 = inlined_call_operand.hbm [shape: f32[1,64], index: 3, kind: input, shape index: {}]
  %s4 = inlined_call_operand.vmem [shape: f32[64,192], index: 4, kind: input, shape index: {}]
  %s5 = inlined_call_operand.hbm [shape: f32[64,64], index: 5, kind: input, shape index: {}]
  %s6 = inlined_call_operand.vmem [shape: f32[1,64], index: 6, kind: input, shape index: {}]
  %s7 = inlined_call_operand.vmem [shape: f32[1,64], index: 7, kind: input, shape index: {}]
  %s8 = inlined_call_operand.hbm [shape: f32[1,64], index: 8, kind: input, shape index: {}]
  %s9 = inlined_call_operand.vmem [shape: f32[64,256], index: 9, kind: input, shape index: {}]
  %s10 = inlined_call_operand.vmem [shape: f32[1,256], index: 10, kind: input, shape index: {}]
  %s11 = inlined_call_operand.vmem [shape: f32[256,64], index: 11, kind: input, shape index: {}]
  %s12 = inlined_call_operand.vmem [shape: f32[1,64], index: 12, kind: input, shape index: {}]
  %s13 = inlined_call_operand.hbm [shape: f32[16,64], index: 13, kind: output, shape index: {}]
  %s14 = sld [smem:[#allocation0]]
  $region82: #{tpu_custom_call.1} parent=0
    _
  %s16 = ssub.s32 1, %s14
  %s17 = scalar_select 0, %s16, %s14
  $region1: #{tpu_custom_call.1} parent=0
    #allocation2 [shape = 'u8[8192]{0}', space=vmem, size = 0x2000, scoped, tag = 'input window, operand 0, single buffered']
    #allocation3 [shape = 's32[1]{0}', space=sflag, size = 0x4, scoped, tag = 'scoped memory for tpu_custom_call.1']
    #allocation4 [shape = 's32[1]{0}', space=sflag, size = 0x4, scoped, tag = 'scoped memory for tpu_custom_call.1']
    #allocation5 [shape = 'u8[512]{0}', space=vmem, size = 0x400, scoped, tag = 'input window, operand 2, single buffered']
    #allocation6 [shape = 's32[1]{0}', space=sflag, size = 0x4, scoped, tag = 'scoped memory for tpu_custom_call.1']
    #allocation7 [shape = 'u8[512]{0}', space=vmem, size = 0x400, scoped, tag = 'input window, operand 3, single buffered']
    #allocation8 [shape = 'u8[32768]{0}', space=vmem, size = 0x8000, scoped, tag = 'input window, operand 5, single buffered']
    #allocation9 [shape = 's32[1]{0}', space=sflag, size = 0x4, scoped, tag = 'scoped memory for tpu_custom_call.1']
    #allocation10 [shape = 'u8[512]{0}', space=vmem, size = 0x400, scoped, tag = 'input window, operand 8, single buffered']
    #allocation11 [shape = 'u8[8192]{0}', space=vmem, size = 0x2000, scoped, tag = 'output window, operand 0, single buffered']
    %18 = vsyncpa [#allocation3], 0
    %19 = vsyncpa [#allocation6], 0
    %20 = vsyncpa [#allocation9], 0
    %21 = vsyncpa [#allocation4], 0
    // Predicated region
    $region2: #{tpu_custom_call.1} parent=1 // pred_check
      _
    $region3: #{tpu_custom_call.1} parent=1 // pred_check_branch
      %23 = sbr.rel (0) target = $region5
    $region4: #{tpu_custom_call.1} parent=1 // pred_region
      %25 = vsyncadd [#allocation3], 0
      %s26 = sshll.u32 %s0, 4
      %s27 = int_to_ptr.hbm [resolvable:$true] %s26
      %s28 = sshll.u32 [#allocation2], 4
      %s29 = int_to_ptr.vmem [resolvable:$true] %s28
      %34 = dma.hbm_to_vmem [thread:$0]  %s27, 256, %s29, [#allocation3], 128, 128, 8
    $region5: #{tpu_custom_call.1} parent=1 // pred_fallthru
      _
    // Predicated region
    $region6: #{tpu_custom_call.1} parent=1 // pred_check
      _
    $region7: #{tpu_custom_call.1} parent=1 // pred_check_branch
      %36 = sbr.rel (0) target = $region9
    $region8: #{tpu_custom_call.1} parent=1 // pred_region
      _
    $region9: #{tpu_custom_call.1} parent=1 // pred_fallthru
      _
    // Predicated region
    $region10: #{tpu_custom_call.1} parent=1 // pred_check
      _
    $region11: #{tpu_custom_call.1} parent=1 // pred_check_branch
      %38 = sbr.rel (0) target = $region13
    $region12: #{tpu_custom_call.1} parent=1 // pred_region
      %40 = vsyncadd [#allocation6], 0
      %s42 = sshll.u32 %s2, 4
      %s43 = int_to_ptr.hbm [resolvable:$true] %s42
      %s44 = sshll.u32 [#allocation5], 4
      %s45 = int_to_ptr.vmem [resolvable:$true] %s44
      %47 = dma.hbm_to_vmem [thread:$0]  %s43, 16, %s45, [#allocation6]
    $region13: #{tpu_custom_call.1} parent=1 // pred_fallthru
      _
    // Predicated region
    $region14: #{tpu_custom_call.1} parent=1 // pred_check
      _
    $region15: #{tpu_custom_call.1} parent=1 // pred_check_branch
      %49 = sbr.rel (0) target = $region17
    $region16: #{tpu_custom_call.1} parent=1 // pred_region
      %51 = vsyncadd [#allocation6], 0
      %s53 = sshll.u32 %s3, 4
      %s54 = int_to_ptr.hbm [resolvable:$true] %s53
      %s55 = sshll.u32 [#allocation7], 4
      %s56 = int_to_ptr.vmem [resolvable:$true] %s55
      %58 = dma.hbm_to_vmem [thread:$0]  %s54, 16, %s56, [#allocation6]
    $region17: #{tpu_custom_call.1} parent=1 // pred_fallthru
      _
    // Predicated region
    $region18: #{tpu_custom_call.1} parent=1 // pred_check
      _
    $region19: #{tpu_custom_call.1} parent=1 // pred_check_branch
      %60 = sbr.rel (0) target = $region21
    $region20: #{tpu_custom_call.1} parent=1 // pred_region
      _
    $region21: #{tpu_custom_call.1} parent=1 // pred_fallthru
      _
    // Predicated region
    $region22: #{tpu_custom_call.1} parent=1 // pred_check
      _
    $region23: #{tpu_custom_call.1} parent=1 // pred_check_branch
      %62 = sbr.rel (0) target = $region25
    $region24: #{tpu_custom_call.1} parent=1 // pred_region
      %64 = vsyncadd [#allocation9], 0
      %s65 = sshll.u32 %s5, 4
      %s66 = int_to_ptr.hbm [resolvable:$true] %s65
      %s67 = sshll.u32 [#allocation8], 4
      %s68 = int_to_ptr.vmem [resolvable:$true] %s67
      %73 = dma.hbm_to_vmem [thread:$0]  %s66, 1024, %s68, [#allocation9], 128, 128, 8
    $region25: #{tpu_custom_call.1} parent=1 // pred_fallthru
      _
    // Predicated region
    $region26: #{tpu_custom_call.1} parent=1 // pred_check
      _
    $region27: #{tpu_custom_call.1} parent=1 // pred_check_branch
      %75 = sbr.rel (0) target = $region29
    $region28: #{tpu_custom_call.1} parent=1 // pred_region
      _
    $region29: #{tpu_custom_call.1} parent=1 // pred_fallthru
      _
    // Predicated region
    $region30: #{tpu_custom_call.1} parent=1 // pred_check
      _
    $region31: #{tpu_custom_call.1} parent=1 // pred_check_branch
      %77 = sbr.rel (0) target = $region33
    $region32: #{tpu_custom_call.1} parent=1 // pred_region
      _
    $region33: #{tpu_custom_call.1} parent=1 // pred_fallthru
      _
    // Predicated region
    $region34: #{tpu_custom_call.1} parent=1 // pred_check
      _
    $region35: #{tpu_custom_call.1} parent=1 // pred_check_branch
      %79 = sbr.rel (0) target = $region37
    $region36: #{tpu_custom_call.1} parent=1 // pred_region
      %81 = vsyncadd [#allocation9], 0
      %s83 = sshll.u32 %s8, 4
      %s84 = int_to_ptr.hbm [resolvable:$true] %s83
      %s85 = sshll.u32 [#allocation10], 4
      %s86 = int_to_ptr.vmem [resolvable:$true] %s85
      %88 = dma.hbm_to_vmem [thread:$0]  %s84, 16, %s86, [#allocation9]
    $region37: #{tpu_custom_call.1} parent=1 // pred_fallthru
      _
    // Predicated region
    $region38: #{tpu_custom_call.1} parent=1 // pred_check
      _
    $region39: #{tpu_custom_call.1} parent=1 // pred_check_branch
      %90 = sbr.rel (0) target = $region41
    $region40: #{tpu_custom_call.1} parent=1 // pred_region
      _
    $region41: #{tpu_custom_call.1} parent=1 // pred_fallthru
      _
    // Predicated region
    $region42: #{tpu_custom_call.1} parent=1 // pred_check
      _
    $region43: #{tpu_custom_call.1} parent=1 // pred_check_branch
      %92 = sbr.rel (0) target = $region45
    $region44: #{tpu_custom_call.1} parent=1 // pred_region
      _
    $region45: #{tpu_custom_call.1} parent=1 // pred_fallthru
      _
    // Predicated region
    $region46: #{tpu_custom_call.1} parent=1 // pred_check
      _
    $region47: #{tpu_custom_call.1} parent=1 // pred_check_branch
      %94 = sbr.rel (0) target = $region49
    $region48: #{tpu_custom_call.1} parent=1 // pred_region
      _
    $region49: #{tpu_custom_call.1} parent=1 // pred_fallthru
      _
    // Predicated region
    $region50: #{tpu_custom_call.1} parent=1 // pred_check
      _
    $region51: #{tpu_custom_call.1} parent=1 // pred_check_branch
      %96 = sbr.rel (0) target = $region53
    $region52: #{tpu_custom_call.1} parent=1 // pred_region
      _
    $region53: #{tpu_custom_call.1} parent=1 // pred_fallthru
      _
    // Predicated region
    $region54: #{tpu_custom_call.1} parent=1 // pred_check
      _
    $region55: #{tpu_custom_call.1} parent=1 // pred_check_branch
      %98 = sbr.rel (0) target = $region57
    $region56: #{tpu_custom_call.1} parent=1 // pred_region
      %100 = dma.done [#allocation3], 256
    $region57: #{tpu_custom_call.1} parent=1 // pred_fallthru
      _
    // Predicated region
    $region58: #{tpu_custom_call.1} parent=1 // pred_check
      _
    $region59: #{tpu_custom_call.1} parent=1 // pred_check_branch
      %102 = sbr.rel (0) target = $region61
    $region60: #{tpu_custom_call.1} parent=1 // pred_region
      %104 = dma.done [#allocation6], 16
    $region61: #{tpu_custom_call.1} parent=1 // pred_fallthru
      _
    // Predicated region
    $region62: #{tpu_custom_call.1} parent=1 // pred_check
      _
    $region63: #{tpu_custom_call.1} parent=1 // pred_check_branch
      %106 = sbr.rel (0) target = $region65
    $region64: #{tpu_custom_call.1} parent=1 // pred_region
      %108 = dma.done [#allocation6], 16
    $region65: #{tpu_custom_call.1} parent=1 // pred_fallthru
      _
    // Predicated region
    $region66: #{tpu_custom_call.1} parent=1 // pred_check
      _
    $region67: #{tpu_custom_call.1} parent=1 // pred_check_branch
      %110 = sbr.rel (0) target = $region69
    $region68: #{tpu_custom_call.1} parent=1 // pred_region
      %112 = dma.done [#allocation9], 1024
    $region69: #{tpu_custom_call.1} parent=1 // pred_fallthru
      _
    // Predicated region
    $region70: #{tpu_custom_call.1} parent=1 // pred_check
      _
    $region71: #{tpu_custom_call.1} parent=1 // pred_check_branch
      %114 = sbr.rel (0) target = $region73
    $region72: #{tpu_custom_call.1} parent=1 // pred_region
      %116 = dma.done [#allocation9], 16
    $region73: #{tpu_custom_call.1} parent=1 // pred_fallthru
      _
    %v117 = vld [vmem:[#allocation2] sm:$0xff]
    %v118 = vld [vmem:[#allocation2 + $0x8] sm:$0xff]
    %v119 = vld [vmem:[#allocation5] sm:$0x1]
    %v120 = vld [vmem:[#allocation7] sm:$0x1]
    %vm121 = vcmask 523264
    %v122 = vsel %vm121, %v117, 0.0
    %123 = vadd.xlane.f32.xlu0 %v122
    %v124 = vpop.xlane.xlu0 %123
    %v125 = vsel %vm121, %v118, 0.0
    %126 = vadd.xlane.f32.xlu0 %v125
    %v127 = vpop.xlane.xlu0 %126
    %v128 = vrcp.pop 64.0
    %v129 = vmul.f32 64.0, %v128
    %v130 = vsub.f32 1.0, %v129
    %v131 = vmul.f32 %v128, %v130
    %v132 = vadd.f32 %v128, %v131
    %vm133 = vweird.f32 %v128
    %v134 = vsel %vm133, %v128, %v132
    %v135 = vmul.f32 %v124, %v134
    %v136 = vmul.f32 %v127, %v134
    %v137 = vsub.f32 %v117, %v135
    %v138 = vsub.f32 %v118, %v136
    %v139 = vmul.f32 %v137, %v137
    %v140 = vmul.f32 %v138, %v138
    %v141 = vsel %vm121, %v139, 0.0
    %142 = vadd.xlane.f32.xlu0 %v141
    %v143 = vpop.xlane.xlu0 %142
    %v144 = vsel %vm121, %v140, 0.0
    %145 = vadd.xlane.f32.xlu0 %v144
    %v146 = vpop.xlane.xlu0 %145
    %v147 = vmul.f32 %v143, %v134
    %v148 = vmul.f32 %v146, %v134
    %v149 = vadd.f32 %v147, 1e-05
    %v150 = vadd.f32 %v148, 1e-05
    %v151 = vrsqrt.pop %v149
    %v152 = vmul.f32 %v151, %v149
    %v153 = vmul.f32 %v152, %v151
    %v154 = vmul.f32 0.5, %v153
    %v155 = vsub.f32 1.5, %v154
    %v156 = vmul.f32 %v151, %v155
    %vm157 = vweird.f32 %v149
    %vm158 = vweird.f32 %v151
    %vm159 = vmor %vm157, %vm158
    %v160 = vsel %vm159, %v151, %v156
    %v161 = vrsqrt.pop %v150
    %v162 = vmul.f32 %v161, %v150
    %v163 = vmul.f32 %v162, %v161
    %v164 = vmul.f32 0.5, %v163
    %v165 = vsub.f32 1.5, %v164
    %v166 = vmul.f32 %v161, %v165
    %vm167 = vweird.f32 %v150
    %vm168 = vweird.f32 %v161
    %vm169 = vmor %vm167, %vm168
    %v170 = vsel %vm169, %v161, %v166
    %v171 = vmul.f32 %v137, %v160
    %v172 = vmul.f32 %v138, %v170
    %v174 = vperm.slane %v119, 0
    %v176 = vmul.f32 %v171, %v174
    %v177 = vmul.f32 %v172, %v174
    %v179 = vperm.slane %v120, 0
    %v181 = vadd.f32 %v176, %v179
    %v182 = vadd.f32 %v177, %v179
    %v183 = vld [vmem:[%s4] sm:$0xff]
    %v184 = vld [vmem:[%s4 + $0x8] sm:$0xff]
    %v185 = vld [vmem:[%s4 + $0x10] sm:$0xff]
    %v186 = vld [vmem:[%s4 + $0x18] sm:$0xff]
    %v187 = vld [vmem:[%s4 + $0x20] sm:$0xff]
    %v188 = vld [vmem:[%s4 + $0x28] sm:$0xff]
    %v189 = vld [vmem:[%s4 + $0x30] sm:$0xff]
    %v190 = vld [vmem:[%s4 + $0x38] sm:$0xff]
    %v191 = vld [vmem:[%s4 + $0x40] sm:$0xff]
    %v192 = vld [vmem:[%s4 + $0x48] sm:$0xff]
    %v193 = vld [vmem:[%s4 + $0x50] sm:$0xff]
    %v194 = vld [vmem:[%s4 + $0x58] sm:$0xff]
    %v195 = vld [vmem:[%s4 + $0x60] sm:$0xff]
    %v196 = vld [vmem:[%s4 + $0x68] sm:$0xff]
    %v197 = vld [vmem:[%s4 + $0x70] sm:$0xff]
    %v198 = vld [vmem:[%s4 + $0x78] sm:$0xff]
    %v200 = vsel %vm121, %v181, 0
    %v203 = vsel %vm121, %v182, 0
    %205 = vmatpush.msra.mxu0 0.0
    %206 = vmatpush.msra.mxu0 0.0
    %207 = vmatpush.msra.mxu0 0.0
    %208 = vmatpush.msra.mxu0 0.0
    %209 = vmatpush.msra.mxu0 0.0
    %210 = vmatpush.msra.mxu0 0.0
    %211 = vmatpush.msra.mxu0 0.0
    %212 = vmatpush.msra.mxu0 0.0
    %213 = vmatpush.msra.mxu0 %v197
    %214 = vmatpush.msra.mxu0 %v195
    %215 = vmatpush.msra.mxu0 %v193
    %216 = vmatpush.msra.mxu0 %v191
    %217 = vmatpush.msra.mxu0 %v189
    %218 = vmatpush.msra.mxu0 %v187
    %219 = vmatpush.msra.mxu0 %v185
    %220 = vmatpush.msra.mxu0 %v183
    %221 = vmatmul.f32.gmra.mxu0 %v200
    %v222 = vpop.f32.mrf.mxu0
    %v223 = vadd.f32 0.0, %v222
    %224 = vmatmul.f32.gmra.mxu0 %v203
    %v225 = vpop.f32.mrf.mxu0
    %v226 = vadd.f32 0.0, %v225
    %227 = vdwg.mxu0
    %228 = vmatpush.msra.mxu0 0.0
    %229 = vmatpush.msra.mxu0 0.0
    %230 = vmatpush.msra.mxu0 0.0
    %231 = vmatpush.msra.mxu0 0.0
    %232 = vmatpush.msra.mxu0 0.0
    %233 = vmatpush.msra.mxu0 0.0
    %234 = vmatpush.msra.mxu0 0.0
    %235 = vmatpush.msra.mxu0 0.0
    %236 = vmatpush.msra.mxu0 %v198
    %237 = vmatpush.msra.mxu0 %v196
    %238 = vmatpush.msra.mxu0 %v194
    %239 = vmatpush.msra.mxu0 %v192
    %240 = vmatpush.msra.mxu0 %v190
    %241 = vmatpush.msra.mxu0 %v188
    %242 = vmatpush.msra.mxu0 %v186
    %243 = vmatpush.msra.mxu0 %v184
    %244 = vmatmul.f32.gmra.mxu0 %v200
    %v245 = vpop.f32.mrf.mxu0
    %v246 = vadd.f32 0.0, %v245
    %247 = vmatmul.f32.gmra.mxu0 %v203
    %v248 = vpop.f32.mrf.mxu0
    %v249 = vadd.f32 0.0, %v248
    %250 = vdwg.mxu0
    %253 = vrot.lane.b32.xlu0 %v223, 120
    %v254 = vpop.permute.xlu0 %253
    %255 = vrot.lane.b32.xlu0 %v226, 120
    %v256 = vpop.permute.xlu0 %255
    %257 = vrot.lane.b32.xlu0 %v223, 112
    %v258 = vpop.permute.xlu0 %257
    %259 = vrot.lane.b32.xlu0 %v226, 112
    %v260 = vpop.permute.xlu0 %259
    %261 = vrot.lane.b32.xlu0 %v223, 104
    %v262 = vpop.permute.xlu0 %261
    %263 = vrot.lane.b32.xlu0 %v226, 104
    %v264 = vpop.permute.xlu0 %263
    %265 = vrot.lane.b32.xlu0 %v223, 96
    %v266 = vpop.permute.xlu0 %265
    %267 = vrot.lane.b32.xlu0 %v226, 96
    %v268 = vpop.permute.xlu0 %267
    %269 = vrot.lane.b32.xlu0 %v223, 88
    %v270 = vpop.permute.xlu0 %269
    %271 = vrot.lane.b32.xlu0 %v226, 88
    %v272 = vpop.permute.xlu0 %271
    %273 = vrot.lane.b32.xlu0 %v223, 80
    %v274 = vpop.permute.xlu0 %273
    %275 = vrot.lane.b32.xlu0 %v226, 80
    %v276 = vpop.permute.xlu0 %275
    %277 = vrot.lane.b32.xlu0 %v223, 72
    %v278 = vpop.permute.xlu0 %277
    %279 = vrot.lane.b32.xlu0 %v226, 72
    %v280 = vpop.permute.xlu0 %279
    %283 = vrot.lane.b32.xlu0 %v246, 120
    %v284 = vpop.permute.xlu0 %283
    %285 = vrot.lane.b32.xlu0 %v249, 120
    %v286 = vpop.permute.xlu0 %285
    %289 = vrot.lane.b32.xlu0 %v246, 112
    %v290 = vpop.permute.xlu0 %289
    %291 = vrot.lane.b32.xlu0 %v249, 112
    %v292 = vpop.permute.xlu0 %291
    %295 = vrot.lane.b32.xlu0 %v246, 104
    %v296 = vpop.permute.xlu0 %295
    %297 = vrot.lane.b32.xlu0 %v249, 104
    %v298 = vpop.permute.xlu0 %297
    %301 = vrot.lane.b32.xlu0 %v246, 96
    %v302 = vpop.permute.xlu0 %301
    %303 = vrot.lane.b32.xlu0 %v249, 96
    %v304 = vpop.permute.xlu0 %303
    %307 = vrot.lane.b32.xlu0 %v246, 88
    %v308 = vpop.permute.xlu0 %307
    %309 = vrot.lane.b32.xlu0 %v249, 88
    %v310 = vpop.permute.xlu0 %309
    %313 = vrot.lane.b32.xlu0 %v246, 80
    %v314 = vpop.permute.xlu0 %313
    %315 = vrot.lane.b32.xlu0 %v249, 80
    %v316 = vpop.permute.xlu0 %315
    %319 = vrot.lane.b32.xlu0 %v246, 72
    %v320 = vpop.permute.xlu0 %319
    %321 = vrot.lane.b32.xlu0 %v249, 72
    %v322 = vpop.permute.xlu0 %321
    %v325 = vld [vmem:[%s1] sm:$0xff]
    %v326 = vld [vmem:[%s1 + $0x8] sm:$0xff]
    %v327 = vld [vmem:[%s1 + $0x10] sm:$0xff]
    %v328 = vld [vmem:[%s1 + $0x18] sm:$0xff]
    %v329 = vld [vmem:[%s1 + $0x20] sm:$0xff]
    %v330 = vld [vmem:[%s1 + $0x28] sm:$0xff]
    %v331 = vld [vmem:[%s1 + $0x30] sm:$0xff]
    %v332 = vld [vmem:[%s1 + $0x38] sm:$0xff]
    %v333 = vld [vmem:[%s1 + $0x40] sm:$0xff]
    %v334 = vld [vmem:[%s1 + $0x48] sm:$0xff]
    %v335 = vld [vmem:[%s1 + $0x50] sm:$0xff]
    %v336 = vld [vmem:[%s1 + $0x58] sm:$0xff]
    %v337 = vld [vmem:[%s1 + $0x60] sm:$0xff]
    %v338 = vld [vmem:[%s1 + $0x68] sm:$0xff]
    %v339 = vld [vmem:[%s1 + $0x70] sm:$0xff]
    %v340 = vld [vmem:[%s1 + $0x78] sm:$0xff]
    %341 = vrot.lane.b32.xlu0 %v223, 64
    %v342 = vpop.permute.xlu0 %341
    %343 = vrot.lane.b32.xlu0 %v226, 64
    %v344 = vpop.permute.xlu0 %343
    %345 = vrot.lane.b32.xlu0 %v254, 64
    %v346 = vpop.permute.xlu0 %345
    %347 = vrot.lane.b32.xlu0 %v256, 64
    %v348 = vpop.permute.xlu0 %347
    %349 = vrot.lane.b32.xlu0 %v258, 64
    %v350 = vpop.permute.xlu0 %349
    %351 = vrot.lane.b32.xlu0 %v260, 64
    %v352 = vpop.permute.xlu0 %351
    %353 = vrot.lane.b32.xlu0 %v262, 64
    %v354 = vpop.permute.xlu0 %353
    %355 = vrot.lane.b32.xlu0 %v264, 64
    %v356 = vpop.permute.xlu0 %355
    %357 = vrot.lane.b32.xlu0 %v266, 64
    %v358 = vpop.permute.xlu0 %357
    %359 = vrot.lane.b32.xlu0 %v268, 64
    %v360 = vpop.permute.xlu0 %359
    %361 = vrot.lane.b32.xlu0 %v270, 64
    %v362 = vpop.permute.xlu0 %361
    %363 = vrot.lane.b32.xlu0 %v272, 64
    %v364 = vpop.permute.xlu0 %363
    %365 = vrot.lane.b32.xlu0 %v274, 64
    %v366 = vpop.permute.xlu0 %365
    %367 = vrot.lane.b32.xlu0 %v276, 64
    %v368 = vpop.permute.xlu0 %367
    %369 = vrot.lane.b32.xlu0 %v278, 64
    %v370 = vpop.permute.xlu0 %369
    %371 = vrot.lane.b32.xlu0 %v280, 64
    %v372 = vpop.permute.xlu0 %371
    %vm373 = vcmask 64512
    %v374 = vsel %vm373, %v223, 0
    %v376 = vsel %vm373, %v226, 0
    %v378 = vsel %vm373, %v254, 0
    %v380 = vsel %vm373, %v256, 0
    %v382 = vsel %vm373, %v258, 0
    %v384 = vsel %vm373, %v260, 0
    %v386 = vsel %vm373, %v262, 0
    %v388 = vsel %vm373, %v264, 0
    %v390 = vsel %vm373, %v266, 0
    %v392 = vsel %vm373, %v268, 0
    %v394 = vsel %vm373, %v270, 0
    %v396 = vsel %vm373, %v272, 0
    %v398 = vsel %vm373, %v274, 0
    %v400 = vsel %vm373, %v276, 0
    %v402 = vsel %vm373, %v278, 0
    %v404 = vsel %vm373, %v280, 0
    %v406 = vsel %vm373, %v342, 0
    %v408 = vsel %vm373, %v344, 0
    %v410 = vsel %vm373, %v346, 0
    %v412 = vsel %vm373, %v348, 0
    %v414 = vsel %vm373, %v350, 0
    %v416 = vsel %vm373, %v352, 0
    %v418 = vsel %vm373, %v354, 0
    %v420 = vsel %vm373, %v356, 0
    %v422 = vsel %vm373, %v358, 0
    %v424 = vsel %vm373, %v360, 0
    %v426 = vsel %vm373, %v362, 0
    %v428 = vsel %vm373, %v364, 0
    %v430 = vsel %vm373, %v366, 0
    %v432 = vsel %vm373, %v368, 0
    %v434 = vsel %vm373, %v370, 0
    %v436 = vsel %vm373, %v372, 0
    %438 = vmatpush.xpose.msra.mxu0 %v436
    %439 = vmatpush.xpose.msra.mxu0 %v434
    %440 = vmatpush.xpose.msra.mxu0 %v432
    %441 = vmatpush.xpose.msra.mxu0 %v430
    %442 = vmatpush.xpose.msra.mxu0 %v428
    %443 = vmatpush.xpose.msra.mxu0 %v426
    %444 = vmatpush.xpose.msra.mxu0 %v424
    %445 = vmatpush.xpose.msra.mxu0 %v422
    %446 = vmatpush.xpose.msra.mxu0 %v420
    %447 = vmatpush.xpose.msra.mxu0 %v418
    %448 = vmatpush.xpose.msra.mxu0 %v416
    %449 = vmatpush.xpose.msra.mxu0 %v414
    %450 = vmatpush.xpose.msra.mxu0 %v412
    %451 = vmatpush.xpose.msra.mxu0 %v410
    %452 = vmatpush.xpose.msra.mxu0 %v408
    %453 = vmatpush.xpose.msra.mxu0 %v406
    %454 = vmatmul.f32.gmra.mxu0 %v374
    %v455 = vpop.f32.mrf.mxu0
    %v456 = vadd.f32 %v325, %v455
    %457 = vmatmul.f32.gmra.mxu0 %v376
    %v458 = vpop.f32.mrf.mxu0
    %v459 = vadd.f32 %v326, %v458
    %460 = vmatmul.f32.gmra.mxu0 %v378
    %v461 = vpop.f32.mrf.mxu0
    %v462 = vadd.f32 %v327, %v461
    %463 = vmatmul.f32.gmra.mxu0 %v380
    %v464 = vpop.f32.mrf.mxu0
    %v465 = vadd.f32 %v328, %v464
    %466 = vmatmul.f32.gmra.mxu0 %v382
    %v467 = vpop.f32.mrf.mxu0
    %v468 = vadd.f32 %v329, %v467
    %469 = vmatmul.f32.gmra.mxu0 %v384
    %v470 = vpop.f32.mrf.mxu0
    %v471 = vadd.f32 %v330, %v470
    %472 = vmatmul.f32.gmra.mxu0 %v386
    %v473 = vpop.f32.mrf.mxu0
    %v474 = vadd.f32 %v331, %v473
    %475 = vmatmul.f32.gmra.mxu0 %v388
    %v476 = vpop.f32.mrf.mxu0
    %v477 = vadd.f32 %v332, %v476
    %478 = vmatmul.f32.gmra.mxu0 %v390
    %v479 = vpop.f32.mrf.mxu0
    %v480 = vadd.f32 %v333, %v479
    %481 = vmatmul.f32.gmra.mxu0 %v392
    %v482 = vpop.f32.mrf.mxu0
    %v483 = vadd.f32 %v334, %v482
    %484 = vmatmul.f32.gmra.mxu0 %v394
    %v485 = vpop.f32.mrf.mxu0
    %v486 = vadd.f32 %v335, %v485
    %487 = vmatmul.f32.gmra.mxu0 %v396
    %v488 = vpop.f32.mrf.mxu0
    %v489 = vadd.f32 %v336, %v488
    %490 = vmatmul.f32.gmra.mxu0 %v398
    %v491 = vpop.f32.mrf.mxu0
    %v492 = vadd.f32 %v337, %v491
    %493 = vmatmul.f32.gmra.mxu0 %v400
    %v494 = vpop.f32.mrf.mxu0
    %v495 = vadd.f32 %v338, %v494
    %496 = vmatmul.f32.gmra.mxu0 %v402
    %v497 = vpop.f32.mrf.mxu0
    %v498 = vadd.f32 %v339, %v497
    %499 = vmatmul.f32.gmra.mxu0 %v404
    %v500 = vpop.f32.mrf.mxu0
    %v501 = vadd.f32 %v340, %v500
    %502 = vdwg.mxu0
    %503 = vmax.xlane.f32.xlu0 %v456
    %v504 = vpop.xlane.xlu0 %503
    %505 = vmax.xlane.f32.xlu0 %v459
    %v506 = vpop.xlane.xlu0 %505
    %507 = vmax.xlane.f32.xlu0 %v462
    %v508 = vpop.xlane.xlu0 %507
    %509 = vmax.xlane.f32.xlu0 %v465
    %v510 = vpop.xlane.xlu0 %509
    %511 = vmax.xlane.f32.xlu0 %v468
    %v512 = vpop.xlane.xlu0 %511
    %513 = vmax.xlane.f32.xlu0 %v471
    %v514 = vpop.xlane.xlu0 %513
    %515 = vmax.xlane.f32.xlu0 %v474
    %v516 = vpop.xlane.xlu0 %515
    %517 = vmax.xlane.f32.xlu0 %v477
    %v518 = vpop.xlane.xlu0 %517
    %519 = vmax.xlane.f32.xlu0 %v480
    %v520 = vpop.xlane.xlu0 %519
    %521 = vmax.xlane.f32.xlu0 %v483
    %v522 = vpop.xlane.xlu0 %521
    %523 = vmax.xlane.f32.xlu0 %v486
    %v524 = vpop.xlane.xlu0 %523
    %525 = vmax.xlane.f32.xlu0 %v489
    %v526 = vpop.xlane.xlu0 %525
    %527 = vmax.xlane.f32.xlu0 %v492
    %v528 = vpop.xlane.xlu0 %527
    %529 = vmax.xlane.f32.xlu0 %v495
    %v530 = vpop.xlane.xlu0 %529
    %531 = vmax.xlane.f32.xlu0 %v498
    %v532 = vpop.xlane.xlu0 %531
    %533 = vmax.xlane.f32.xlu0 %v501
    %v534 = vpop.xlane.xlu0 %533
    %v535 = vsub.f32 %v456, %v504
    %v536 = vsub.f32 %v459, %v506
    %v537 = vsub.f32 %v462, %v508
    %v538 = vsub.f32 %v465, %v510
    %v539 = vsub.f32 %v468, %v512
    %v540 = vsub.f32 %v471, %v514
    %v541 = vsub.f32 %v474, %v516
    %v542 = vsub.f32 %v477, %v518
    %v543 = vsub.f32 %v480, %v520
    %v544 = vsub.f32 %v483, %v522
    %v545 = vsub.f32 %v486, %v524
    %v546 = vsub.f32 %v489, %v526
    %v547 = vsub.f32 %v492, %v528
    %v548 = vsub.f32 %v495, %v530
    %v549 = vsub.f32 %v498, %v532
    %v550 = vsub.f32 %v501, %v534
    %v551 = vmul.f32 %v535, 1.442695
    %v552 = vpow.pop %v551
    %v553 = vmul.f32 %v536, 1.442695
    %v554 = vpow.pop %v553
    %v555 = vmul.f32 %v537, 1.442695
    %v556 = vpow.pop %v555
    %v557 = vmul.f32 %v538, 1.442695
    %v558 = vpow.pop %v557
    %v559 = vmul.f32 %v539, 1.442695
    %v560 = vpow.pop %v559
    %v561 = vmul.f32 %v540, 1.442695
    %v562 = vpow.pop %v561
    %v563 = vmul.f32 %v541, 1.442695
    %v564 = vpow.pop %v563
    %v565 = vmul.f32 %v542, 1.442695
    %v566 = vpow.pop %v565
    %v567 = vmul.f32 %v543, 1.442695
    %v568 = vpow.pop %v567
    %v569 = vmul.f32 %v544, 1.442695
    %v570 = vpow.pop %v569
    %v571 = vmul.f32 %v545, 1.442695
    %v572 = vpow.pop %v571
    %v573 = vmul.f32 %v546, 1.442695
    %v574 = vpow.pop %v573
    %v575 = vmul.f32 %v547, 1.442695
    %v576 = vpow.pop %v575
    %v577 = vmul.f32 %v548, 1.442695
    %v578 = vpow.pop %v577
    %v579 = vmul.f32 %v549, 1.442695
    %v580 = vpow.pop %v579
    %v581 = vmul.f32 %v550, 1.442695
    %v582 = vpow.pop %v581
    %583 = vadd.xlane.f32.xlu0 %v552
    %v584 = vpop.xlane.xlu0 %583
    %585 = vadd.xlane.f32.xlu0 %v554
    %v586 = vpop.xlane.xlu0 %585
    %587 = vadd.xlane.f32.xlu0 %v556
    %v588 = vpop.xlane.xlu0 %587
    %589 = vadd.xlane.f32.xlu0 %v558
    %v590 = vpop.xlane.xlu0 %589
    %591 = vadd.xlane.f32.xlu0 %v560
    %v592 = vpop.xlane.xlu0 %591
    %593 = vadd.xlane.f32.xlu0 %v562
    %v594 = vpop.xlane.xlu0 %593
    %595 = vadd.xlane.f32.xlu0 %v564
    %v596 = vpop.xlane.xlu0 %595
    %597 = vadd.xlane.f32.xlu0 %v566
    %v598 = vpop.xlane.xlu0 %597
    %599 = vadd.xlane.f32.xlu0 %v568
    %v600 = vpop.xlane.xlu0 %599
    %601 = vadd.xlane.f32.xlu0 %v570
    %v602 = vpop.xlane.xlu0 %601
    %603 = vadd.xlane.f32.xlu0 %v572
    %v604 = vpop.xlane.xlu0 %603
    %605 = vadd.xlane.f32.xlu0 %v574
    %v606 = vpop.xlane.xlu0 %605
    %607 = vadd.xlane.f32.xlu0 %v576
    %v608 = vpop.xlane.xlu0 %607
    %609 = vadd.xlane.f32.xlu0 %v578
    %v610 = vpop.xlane.xlu0 %609
    %611 = vadd.xlane.f32.xlu0 %v580
    %v612 = vpop.xlane.xlu0 %611
    %613 = vadd.xlane.f32.xlu0 %v582
    %v614 = vpop.xlane.xlu0 %613
    %v615 = vrcp.pop %v584
    %v616 = vrcp.pop %v586
    %v617 = vrcp.pop %v588
    %v618 = vrcp.pop %v590
    %v619 = vrcp.pop %v592
    %v620 = vrcp.pop %v594
    %v621 = vrcp.pop %v596
    %v622 = vrcp.pop %v598
    %v623 = vrcp.pop %v600
    %v624 = vrcp.pop %v602
    %v625 = vrcp.pop %v604
    %v626 = vrcp.pop %v606
    %v627 = vrcp.pop %v608
    %v628 = vrcp.pop %v610
    %v629 = vrcp.pop %v612
    %v630 = vrcp.pop %v614
    %v631 = vmul.f32 %v552, %v615
    %v632 = vmul.f32 %v554, %v616
    %v633 = vmul.f32 %v556, %v617
    %v634 = vmul.f32 %v558, %v618
    %v635 = vmul.f32 %v560, %v619
    %v636 = vmul.f32 %v562, %v620
    %v637 = vmul.f32 %v564, %v621
    %v638 = vmul.f32 %v566, %v622
    %v639 = vmul.f32 %v568, %v623
    %v640 = vmul.f32 %v570, %v624
    %v641 = vmul.f32 %v572, %v625
    %v642 = vmul.f32 %v574, %v626
    %v643 = vmul.f32 %v576, %v627
    %v644 = vmul.f32 %v578, %v628
    %v645 = vmul.f32 %v580, %v629
    %v646 = vmul.f32 %v582, %v630
    %647 = vmatpush.msra.mxu0 %v322
    %648 = vmatpush.msra.mxu0 %v320
    %649 = vmatpush.msra.mxu0 %v316
    %650 = vmatpush.msra.mxu0 %v314
    %651 = vmatpush.msra.mxu0 %v310
    %652 = vmatpush.msra.mxu0 %v308
    %653 = vmatpush.msra.mxu0 %v304
    %654 = vmatpush.msra.mxu0 %v302
    %655 = vmatpush.msra.mxu0 %v298
    %656 = vmatpush.msra.mxu0 %v296
    %657 = vmatpush.msra.mxu0 %v292
    %658 = vmatpush.msra.mxu0 %v290
    %659 = vmatpush.msra.mxu0 %v286
    %660 = vmatpush.msra.mxu0 %v284
    %661 = vmatpush.msra.mxu0 %v249
    %662 = vmatpush.msra.mxu0 %v246
    %663 = vmatmul.f32.gmra.mxu0 %v631
    %v664 = vpop.f32.mrf.mxu0
    %v665 = vadd.f32 0.0, %v664
    %666 = vmatmul.f32.gmra.mxu0 %v632
    %v667 = vpop.f32.mrf.mxu0
    %v668 = vadd.f32 0.0, %v667
    %669 = vmatmul.f32.gmra.mxu0 %v633
    %v670 = vpop.f32.mrf.mxu0
    %v671 = vadd.f32 0.0, %v670
    %672 = vmatmul.f32.gmra.mxu0 %v634
    %v673 = vpop.f32.mrf.mxu0
    %v674 = vadd.f32 0.0, %v673
    %675 = vmatmul.f32.gmra.mxu0 %v635
    %v676 = vpop.f32.mrf.mxu0
    %v677 = vadd.f32 0.0, %v676
    %678 = vmatmul.f32.gmra.mxu0 %v636
    %v679 = vpop.f32.mrf.mxu0
    %v680 = vadd.f32 0.0, %v679
    %681 = vmatmul.f32.gmra.mxu0 %v637
    %v682 = vpop.f32.mrf.mxu0
    %v683 = vadd.f32 0.0, %v682
    %684 = vmatmul.f32.gmra.mxu0 %v638
    %v685 = vpop.f32.mrf.mxu0
    %v686 = vadd.f32 0.0, %v685
    %687 = vmatmul.f32.gmra.mxu0 %v639
    %v688 = vpop.f32.mrf.mxu0
    %v689 = vadd.f32 0.0, %v688
    %690 = vmatmul.f32.gmra.mxu0 %v640
    %v691 = vpop.f32.mrf.mxu0
    %v692 = vadd.f32 0.0, %v691
    %693 = vmatmul.f32.gmra.mxu0 %v641
    %v694 = vpop.f32.mrf.mxu0
    %v695 = vadd.f32 0.0, %v694
    %696 = vmatmul.f32.gmra.mxu0 %v642
    %v697 = vpop.f32.mrf.mxu0
    %v698 = vadd.f32 0.0, %v697
    %699 = vmatmul.f32.gmra.mxu0 %v643
    %v700 = vpop.f32.mrf.mxu0
    %v701 = vadd.f32 0.0, %v700
    %702 = vmatmul.f32.gmra.mxu0 %v644
    %v703 = vpop.f32.mrf.mxu0
    %v704 = vadd.f32 0.0, %v703
    %705 = vmatmul.f32.gmra.mxu0 %v645
    %v706 = vpop.f32.mrf.mxu0
    %v707 = vadd.f32 0.0, %v706
    %708 = vmatmul.f32.gmra.mxu0 %v646
    %v709 = vpop.f32.mrf.mxu0
    %v710 = vadd.f32 0.0, %v709
    %711 = vdwg.mxu0
    %v712 = vld [vmem:[#allocation8] sm:$0xff]
    %v713 = vld [vmem:[#allocation8 + $0x8] sm:$0xff]
    %v715 = vsel %vm373, %v671, 0
    %v718 = vsel %vm373, %v674, 0
    %720 = vmatpush.msra.mxu0 0.0
    %721 = vmatpush.msra.mxu0 0.0
    %722 = vmatpush.msra.mxu0 0.0
    %723 = vmatpush.msra.mxu0 0.0
    %724 = vmatpush.msra.mxu0 0.0
    %725 = vmatpush.msra.mxu0 0.0
    %726 = vmatpush.msra.mxu0 0.0
    %727 = vmatpush.msra.mxu0 0.0
    %728 = vmatpush.msra.mxu0 0.0
    %729 = vmatpush.msra.mxu0 0.0
    %730 = vmatpush.msra.mxu0 0.0
    %731 = vmatpush.msra.mxu0 0.0
    %732 = vmatpush.msra.mxu0 0.0
    %733 = vmatpush.msra.mxu0 0.0
    %734 = vmatpush.msra.mxu0 0.0
    %735 = vmatpush.msra.mxu0 %v713
    %736 = vmatmul.f32.gmra.mxu0 %v715
    %v737 = vpop.f32.mrf.mxu0
    %v738 = vadd.f32 0.0, %v737
    %739 = vmatmul.f32.gmra.mxu0 %v718
    %v740 = vpop.f32.mrf.mxu0
    %v741 = vadd.f32 0.0, %v740
    %742 = vdwg.mxu0
    %v744 = vsel %vm373, %v665, 0
    %v747 = vsel %vm373, %v668, 0
    %749 = vmatpush.msra.mxu0 0.0
    %750 = vmatpush.msra.mxu0 0.0
    %751 = vmatpush.msra.mxu0 0.0
    %752 = vmatpush.msra.mxu0 0.0
    %753 = vmatpush.msra.mxu0 0.0
    %754 = vmatpush.msra.mxu0 0.0
    %755 = vmatpush.msra.mxu0 0.0
    %756 = vmatpush.msra.mxu0 0.0
    %757 = vmatpush.msra.mxu0 0.0
    %758 = vmatpush.msra.mxu0 0.0
    %759 = vmatpush.msra.mxu0 0.0
    %760 = vmatpush.msra.mxu0 0.0
    %761 = vmatpush.msra.mxu0 0.0
    %762 = vmatpush.msra.mxu0 0.0
    %763 = vmatpush.msra.mxu0 0.0
    %764 = vmatpush.msra.mxu0 %v712
    %765 = vmatmul.f32.gmra.mxu0 %v744
    %v766 = vpop.f32.mrf.mxu0
    %v767 = vadd.f32 %v738, %v766
    %768 = vmatmul.f32.gmra.mxu0 %v747
    %v769 = vpop.f32.mrf.mxu0
    %v770 = vadd.f32 %v741, %v769
    %771 = vdwg.mxu0
    %v772 = vld [vmem:[#allocation8 + $0x10] sm:$0xff]
    %v774 = vsel %vm373, %v677, 0
    %v777 = vsel %vm373, %v680, 0
    %779 = vmatpush.msra.mxu0 0.0
    %780 = vmatpush.msra.mxu0 0.0
    %781 = vmatpush.msra.mxu0 0.0
    %782 = vmatpush.msra.mxu0 0.0
    %783 = vmatpush.msra.mxu0 0.0
    %784 = vmatpush.msra.mxu0 0.0
    %785 = vmatpush.msra.mxu0 0.0
    %786 = vmatpush.msra.mxu0 0.0
    %787 = vmatpush.msra.mxu0 0.0
    %788 = vmatpush.msra.mxu0 0.0
    %789 = vmatpush.msra.mxu0 0.0
    %790 = vmatpush.msra.mxu0 0.0
    %791 = vmatpush.msra.mxu0 0.0
    %792 = vmatpush.msra.mxu0 0.0
    %793 = vmatpush.msra.mxu0 0.0
    %794 = vmatpush.msra.mxu0 %v772
    %795 = vmatmul.f32.gmra.mxu0 %v774
    %v796 = vpop.f32.mrf.mxu0
    %v797 = vadd.f32 0.0, %v796
    %798 = vmatmul.f32.gmra.mxu0 %v777
    %v799 = vpop.f32.mrf.mxu0
    %v800 = vadd.f32 0.0, %v799
    %801 = vdwg.mxu0
    %v802 = vadd.f32 %v767, %v797
    %v803 = vadd.f32 %v770, %v800
    %v804 = vld [vmem:[#allocation8 + $0x18] sm:$0xff]
    %v806 = vsel %vm373, %v683, 0
    %v809 = vsel %vm373, %v686, 0
    %811 = vmatpush.msra.mxu0 0.0
    %812 = vmatpush.msra.mxu0 0.0
    %813 = vmatpush.msra.mxu0 0.0
    %814 = vmatpush.msra.mxu0 0.0
    %815 = vmatpush.msra.mxu0 0.0
    %816 = vmatpush.msra.mxu0 0.0
    %817 = vmatpush.msra.mxu0 0.0
    %818 = vmatpush.msra.mxu0 0.0
    %819 = vmatpush.msra.mxu0 0.0
    %820 = vmatpush.msra.mxu0 0.0
    %821 = vmatpush.msra.mxu0 0.0
    %822 = vmatpush.msra.mxu0 0.0
    %823 = vmatpush.msra.mxu0 0.0
    %824 = vmatpush.msra.mxu0 0.0
    %825 = vmatpush.msra.mxu0 0.0
    %826 = vmatpush.msra.mxu0 %v804
    %827 = vmatmul.f32.gmra.mxu0 %v806
    %v828 = vpop.f32.mrf.mxu0
    %v829 = vadd.f32 0.0, %v828
    %830 = vmatmul.f32.gmra.mxu0 %v809
    %v831 = vpop.f32.mrf.mxu0
    %v832 = vadd.f32 0.0, %v831
    %833 = vdwg.mxu0
    %v834 = vadd.f32 %v802, %v829
    %v835 = vadd.f32 %v803, %v832
    %v836 = vld [vmem:[#allocation8 + $0x20] sm:$0xff]
    %v838 = vsel %vm373, %v689, 0
    %v841 = vsel %vm373, %v692, 0
    %843 = vmatpush.msra.mxu0 0.0
    %844 = vmatpush.msra.mxu0 0.0
    %845 = vmatpush.msra.mxu0 0.0
    %846 = vmatpush.msra.mxu0 0.0
    %847 = vmatpush.msra.mxu0 0.0
    %848 = vmatpush.msra.mxu0 0.0
    %849 = vmatpush.msra.mxu0 0.0
    %850 = vmatpush.msra.mxu0 0.0
    %851 = vmatpush.msra.mxu0 0.0
    %852 = vmatpush.msra.mxu0 0.0
    %853 = vmatpush.msra.mxu0 0.0
    %854 = vmatpush.msra.mxu0 0.0
    %855 = vmatpush.msra.mxu0 0.0
    %856 = vmatpush.msra.mxu0 0.0
    %857 = vmatpush.msra.mxu0 0.0
    %858 = vmatpush.msra.mxu0 %v836
    %859 = vmatmul.f32.gmra.mxu0 %v838
    %v860 = vpop.f32.mrf.mxu0
    %v861 = vadd.f32 0.0, %v860
    %862 = vmatmul.f32.gmra.mxu0 %v841
    %v863 = vpop.f32.mrf.mxu0
    %v864 = vadd.f32 0.0, %v863
    %865 = vdwg.mxu0
    %v866 = vadd.f32 %v834, %v861
    %v867 = vadd.f32 %v835, %v864
    %v868 = vld [vmem:[#allocation8 + $0x28] sm:$0xff]
    %v870 = vsel %vm373, %v695, 0
    %v873 = vsel %vm373, %v698, 0
    %875 = vmatpush.msra.mxu0 0.0
    %876 = vmatpush.msra.mxu0 0.0
    %877 = vmatpush.msra.mxu0 0.0
    %878 = vmatpush.msra.mxu0 0.0
    %879 = vmatpush.msra.mxu0 0.0
    %880 = vmatpush.msra.mxu0 0.0
    %881 = vmatpush.msra.mxu0 0.0
    %882 = vmatpush.msra.mxu0 0.0
    %883 = vmatpush.msra.mxu0 0.0
    %884 = vmatpush.msra.mxu0 0.0
    %885 = vmatpush.msra.mxu0 0.0
    %886 = vmatpush.msra.mxu0 0.0
    %887 = vmatpush.msra.mxu0 0.0
    %888 = vmatpush.msra.mxu0 0.0
    %889 = vmatpush.msra.mxu0 0.0
    %890 = vmatpush.msra.mxu0 %v868
    %891 = vmatmul.f32.gmra.mxu0 %v870
    %v892 = vpop.f32.mrf.mxu0
    %v893 = vadd.f32 0.0, %v892
    %894 = vmatmul.f32.gmra.mxu0 %v873
    %v895 = vpop.f32.mrf.mxu0
    %v896 = vadd.f32 0.0, %v895
    %897 = vdwg.mxu0
    %v898 = vadd.f32 %v866, %v893
    %v899 = vadd.f32 %v867, %v896
    %v900 = vld [vmem:[#allocation8 + $0x30] sm:$0xff]
    %v902 = vsel %vm373, %v701, 0
    %v905 = vsel %vm373, %v704, 0
    %907 = vmatpush.msra.mxu0 0.0
    %908 = vmatpush.msra.mxu0 0.0
    %909 = vmatpush.msra.mxu0 0.0
    %910 = vmatpush.msra.mxu0 0.0
    %911 = vmatpush.msra.mxu0 0.0
    %912 = vmatpush.msra.mxu0 0.0
    %913 = vmatpush.msra.mxu0 0.0
    %914 = vmatpush.msra.mxu0 0.0
    %915 = vmatpush.msra.mxu0 0.0
    %916 = vmatpush.msra.mxu0 0.0
    %917 = vmatpush.msra.mxu0 0.0
    %918 = vmatpush.msra.mxu0 0.0
    %919 = vmatpush.msra.mxu0 0.0
    %920 = vmatpush.msra.mxu0 0.0
    %921 = vmatpush.msra.mxu0 0.0
    %922 = vmatpush.msra.mxu0 %v900
    %923 = vmatmul.f32.gmra.mxu0 %v902
    %v924 = vpop.f32.mrf.mxu0
    %v925 = vadd.f32 0.0, %v924
    %926 = vmatmul.f32.gmra.mxu0 %v905
    %v927 = vpop.f32.mrf.mxu0
    %v928 = vadd.f32 0.0, %v927
    %929 = vdwg.mxu0
    %v930 = vadd.f32 %v898, %v925
    %v931 = vadd.f32 %v899, %v928
    %v932 = vld [vmem:[#allocation8 + $0x38] sm:$0xff]
    %v934 = vsel %vm373, %v707, 0
    %v937 = vsel %vm373, %v710, 0
    %939 = vmatpush.msra.mxu0 0.0
    %940 = vmatpush.msra.mxu0 0.0
    %941 = vmatpush.msra.mxu0 0.0
    %942 = vmatpush.msra.mxu0 0.0
    %943 = vmatpush.msra.mxu0 0.0
    %944 = vmatpush.msra.mxu0 0.0
    %945 = vmatpush.msra.mxu0 0.0
    %946 = vmatpush.msra.mxu0 0.0
    %947 = vmatpush.msra.mxu0 0.0
    %948 = vmatpush.msra.mxu0 0.0
    %949 = vmatpush.msra.mxu0 0.0
    %950 = vmatpush.msra.mxu0 0.0
    %951 = vmatpush.msra.mxu0 0.0
    %952 = vmatpush.msra.mxu0 0.0
    %953 = vmatpush.msra.mxu0 0.0
    %954 = vmatpush.msra.mxu0 %v932
    %955 = vmatmul.f32.gmra.mxu0 %v934
    %v956 = vpop.f32.mrf.mxu0
    %v957 = vadd.f32 0.0, %v956
    %958 = vmatmul.f32.gmra.mxu0 %v937
    %v959 = vpop.f32.mrf.mxu0
    %v960 = vadd.f32 0.0, %v959
    %961 = vdwg.mxu0
    %v962 = vadd.f32 %v930, %v957
    %v963 = vadd.f32 %v931, %v960
    %v964 = vld [vmem:[%s6] sm:$0x1]
    %v966 = vperm.slane %v964, 0
    %v968 = vadd.f32 %v962, %v966
    %v969 = vadd.f32 %v963, %v966
    %v970 = vadd.f32 %v117, %v968
    %v971 = vadd.f32 %v118, %v969
    %v972 = vld [vmem:[%s7] sm:$0x1]
    %v973 = vld [vmem:[#allocation10] sm:$0x1]
    %v974 = vsel %vm121, %v970, 0.0
    %975 = vadd.xlane.f32.xlu0 %v974
    %v976 = vpop.xlane.xlu0 %975
    %v977 = vsel %vm121, %v971, 0.0
    %978 = vadd.xlane.f32.xlu0 %v977
    %v979 = vpop.xlane.xlu0 %978
    %v980 = vmul.f32 %v976, %v134
    %v981 = vmul.f32 %v979, %v134
    %v982 = vsub.f32 %v970, %v980
    %v983 = vsub.f32 %v971, %v981
    %v984 = vmul.f32 %v982, %v982
    %v985 = vmul.f32 %v983, %v983
    %v986 = vsel %vm121, %v984, 0.0
    %987 = vadd.xlane.f32.xlu0 %v986
    %v988 = vpop.xlane.xlu0 %987
    %v989 = vsel %vm121, %v985, 0.0
    %990 = vadd.xlane.f32.xlu0 %v989
    %v991 = vpop.xlane.xlu0 %990
    %v992 = vmul.f32 %v988, %v134
    %v993 = vmul.f32 %v991, %v134
    %v994 = vadd.f32 %v992, 1e-05
    %v995 = vadd.f32 %v993, 1e-05
    %v996 = vrsqrt.pop %v994
    %v997 = vmul.f32 %v996, %v994
    %v998 = vmul.f32 %v997, %v996
    %v999 = vmul.f32 0.5, %v998
    %v1000 = vsub.f32 1.5, %v999
    %v1001 = vmul.f32 %v996, %v1000
    %vm1002 = vweird.f32 %v994
    %vm1003 = vweird.f32 %v996
    %vm1004 = vmor %vm1002, %vm1003
    %v1005 = vsel %vm1004, %v996, %v1001
    %v1006 = vrsqrt.pop %v995
    %v1007 = vmul.f32 %v1006, %v995
    %v1008 = vmul.f32 %v1007, %v1006
    %v1009 = vmul.f32 0.5, %v1008
    %v1010 = vsub.f32 1.5, %v1009
    %v1011 = vmul.f32 %v1006, %v1010
    %vm1012 = vweird.f32 %v995
    %vm1013 = vweird.f32 %v1006
    %vm1014 = vmor %vm1012, %vm1013
    %v1015 = vsel %vm1014, %v1006, %v1011
    %v1016 = vmul.f32 %v982, %v1005
    %v1017 = vmul.f32 %v983, %v1015
    %v1019 = vperm.slane %v972, 0
    %v1021 = vmul.f32 %v1016, %v1019
    %v1022 = vmul.f32 %v1017, %v1019
    %v1024 = vperm.slane %v973, 0
    %v1026 = vadd.f32 %v1021, %v1024
    %v1027 = vadd.f32 %v1022, %v1024
    %v1028 = vld [vmem:[%s9] sm:$0xff]
    %v1029 = vld [vmem:[%s9 + $0x8] sm:$0xff]
    %v1030 = vld [vmem:[%s9 + $0x10] sm:$0xff]
    %v1031 = vld [vmem:[%s9 + $0x18] sm:$0xff]
    %v1032 = vld [vmem:[%s9 + $0x20] sm:$0xff]
    %v1033 = vld [vmem:[%s9 + $0x28] sm:$0xff]
    %v1034 = vld [vmem:[%s9 + $0x30] sm:$0xff]
    %v1035 = vld [vmem:[%s9 + $0x38] sm:$0xff]
    %v1036 = vld [vmem:[%s9 + $0x40] sm:$0xff]
    %v1037 = vld [vmem:[%s9 + $0x48] sm:$0xff]
    %v1038 = vld [vmem:[%s9 + $0x50] sm:$0xff]
    %v1039 = vld [vmem:[%s9 + $0x58] sm:$0xff]
    %v1040 = vld [vmem:[%s9 + $0x60] sm:$0xff]
    %v1041 = vld [vmem:[%s9 + $0x68] sm:$0xff]
    %v1042 = vld [vmem:[%s9 + $0x70] sm:$0xff]
    %v1043 = vld [vmem:[%s9 + $0x78] sm:$0xff]
    %v1044 = vld [vmem:[%s10] sm:$0x3]
    %v1046 = vperm.slane %v1044, 0
    %v1047 = vperm.slane %v1044, 1
    %v1051 = vsel %vm121, %v1026, 0
    %v1054 = vsel %vm121, %v1027, 0
    %1056 = vmatpush.msra.mxu0 0.0
    %1057 = vmatpush.msra.mxu0 0.0
    %1058 = vmatpush.msra.mxu0 0.0
    %1059 = vmatpush.msra.mxu0 0.0
    %1060 = vmatpush.msra.mxu0 0.0
    %1061 = vmatpush.msra.mxu0 0.0
    %1062 = vmatpush.msra.mxu0 0.0
    %1063 = vmatpush.msra.mxu0 0.0
    %1064 = vmatpush.msra.mxu0 %v1042
    %1065 = vmatpush.msra.mxu0 %v1040
    %1066 = vmatpush.msra.mxu0 %v1038
    %1067 = vmatpush.msra.mxu0 %v1036
    %1068 = vmatpush.msra.mxu0 %v1034
    %1069 = vmatpush.msra.mxu0 %v1032
    %1070 = vmatpush.msra.mxu0 %v1030
    %1071 = vmatpush.msra.mxu0 %v1028
    %1072 = vmatmul.f32.gmra.mxu0 %v1051
    %v1073 = vpop.f32.mrf.mxu0
    %v1074 = vadd.f32 %v1046, %v1073
    %1075 = vmatmul.f32.gmra.mxu0 %v1054
    %v1076 = vpop.f32.mrf.mxu0
    %v1077 = vadd.f32 %v1046, %v1076
    %1078 = vdwg.mxu0
    %1079 = vmatpush.msra.mxu0 0.0
    %1080 = vmatpush.msra.mxu0 0.0
    %1081 = vmatpush.msra.mxu0 0.0
    %1082 = vmatpush.msra.mxu0 0.0
    %1083 = vmatpush.msra.mxu0 0.0
    %1084 = vmatpush.msra.mxu0 0.0
    %1085 = vmatpush.msra.mxu0 0.0
    %1086 = vmatpush.msra.mxu0 0.0
    %1087 = vmatpush.msra.mxu0 %v1043
    %1088 = vmatpush.msra.mxu0 %v1041
    %1089 = vmatpush.msra.mxu0 %v1039
    %1090 = vmatpush.msra.mxu0 %v1037
    %1091 = vmatpush.msra.mxu0 %v1035
    %1092 = vmatpush.msra.mxu0 %v1033
    %1093 = vmatpush.msra.mxu0 %v1031
    %1094 = vmatpush.msra.mxu0 %v1029
    %1095 = vmatmul.f32.gmra.mxu0 %v1051
    %v1096 = vpop.f32.mrf.mxu0
    %v1097 = vadd.f32 %v1047, %v1096
    %1098 = vmatmul.f32.gmra.mxu0 %v1054
    %v1099 = vpop.f32.mrf.mxu0
    %v1100 = vadd.f32 %v1047, %v1099
    %1101 = vdwg.mxu0
    %v1102 = vmax.f32 %v1074, 0.0
    %v1103 = vmax.f32 %v1097, 0.0
    %v1104 = vmax.f32 %v1077, 0.0
    %v1105 = vmax.f32 %v1100, 0.0
    %v1106 = vld [vmem:[%s11] sm:$0xff]
    %v1107 = vld [vmem:[%s11 + $0x8] sm:$0xff]
    %v1108 = vld [vmem:[%s11 + $0x10] sm:$0xff]
    %v1109 = vld [vmem:[%s11 + $0x18] sm:$0xff]
    %v1110 = vld [vmem:[%s11 + $0x20] sm:$0xff]
    %v1111 = vld [vmem:[%s11 + $0x28] sm:$0xff]
    %v1112 = vld [vmem:[%s11 + $0x30] sm:$0xff]
    %v1113 = vld [vmem:[%s11 + $0x38] sm:$0xff]
    %v1114 = vld [vmem:[%s11 + $0x40] sm:$0xff]
    %v1115 = vld [vmem:[%s11 + $0x48] sm:$0xff]
    %v1116 = vld [vmem:[%s11 + $0x50] sm:$0xff]
    %v1117 = vld [vmem:[%s11 + $0x58] sm:$0xff]
    %v1118 = vld [vmem:[%s11 + $0x60] sm:$0xff]
    %v1119 = vld [vmem:[%s11 + $0x68] sm:$0xff]
    %v1120 = vld [vmem:[%s11 + $0x70] sm:$0xff]
    %v1121 = vld [vmem:[%s11 + $0x78] sm:$0xff]
    %v1122 = vld [vmem:[%s11 + $0x80] sm:$0xff]
    %v1123 = vld [vmem:[%s11 + $0x88] sm:$0xff]
    %v1124 = vld [vmem:[%s11 + $0x90] sm:$0xff]
    %v1125 = vld [vmem:[%s11 + $0x98] sm:$0xff]
    %v1126 = vld [vmem:[%s11 + $0xa0] sm:$0xff]
    %v1127 = vld [vmem:[%s11 + $0xa8] sm:$0xff]
    %v1128 = vld [vmem:[%s11 + $0xb0] sm:$0xff]
    %v1129 = vld [vmem:[%s11 + $0xb8] sm:$0xff]
    %v1130 = vld [vmem:[%s11 + $0xc0] sm:$0xff]
    %v1131 = vld [vmem:[%s11 + $0xc8] sm:$0xff]
    %v1132 = vld [vmem:[%s11 + $0xd0] sm:$0xff]
    %v1133 = vld [vmem:[%s11 + $0xd8] sm:$0xff]
    %v1134 = vld [vmem:[%s11 + $0xe0] sm:$0xff]
    %v1135 = vld [vmem:[%s11 + $0xe8] sm:$0xff]
    %v1136 = vld [vmem:[%s11 + $0xf0] sm:$0xff]
    %v1137 = vld [vmem:[%s11 + $0xf8] sm:$0xff]
    %v1138 = vld [vmem:[%s12] sm:$0x1]
    %v1140 = vperm.slane %v1138, 0
    %1142 = vmatpush.msra.mxu0 %v1121
    %1143 = vmatpush.msra.mxu0 %v1120
    %1144 = vmatpush.msra.mxu0 %v1119
    %1145 = vmatpush.msra.mxu0 %v1118
    %1146 = vmatpush.msra.mxu0 %v1117
    %1147 = vmatpush.msra.mxu0 %v1116
    %1148 = vmatpush.msra.mxu0 %v1115
    %1149 = vmatpush.msra.mxu0 %v1114
    %1150 = vmatpush.msra.mxu0 %v1113
    %1151 = vmatpush.msra.mxu0 %v1112
    %1152 = vmatpush.msra.mxu0 %v1111
    %1153 = vmatpush.msra.mxu0 %v1110
    %1154 = vmatpush.msra.mxu0 %v1109
    %1155 = vmatpush.msra.mxu0 %v1108
    %1156 = vmatpush.msra.mxu0 %v1107
    %1157 = vmatpush.msra.mxu0 %v1106
    %1158 = vmatmul.f32.gmra.mxu0 %v1102
    %v1159 = vpop.f32.mrf.mxu0
    %v1160 = vadd.f32 %v1140, %v1159
    %1161 = vmatmul.f32.gmra.mxu0 %v1104
    %v1162 = vpop.f32.mrf.mxu0
    %v1163 = vadd.f32 %v1140, %v1162
    %1164 = vdwg.mxu0
    %1165 = vmatpush.msra.mxu0 %v1137
    %1166 = vmatpush.msra.mxu0 %v1136
    %1167 = vmatpush.msra.mxu0 %v1135
    %1168 = vmatpush.msra.mxu0 %v1134
    %1169 = vmatpush.msra.mxu0 %v1133
    %1170 = vmatpush.msra.mxu0 %v1132
    %1171 = vmatpush.msra.mxu0 %v1131
    %1172 = vmatpush.msra.mxu0 %v1130
    %1173 = vmatpush.msra.mxu0 %v1129
    %1174 = vmatpush.msra.mxu0 %v1128
    %1175 = vmatpush.msra.mxu0 %v1127
    %1176 = vmatpush.msra.mxu0 %v1126
    %1177 = vmatpush.msra.mxu0 %v1125
    %1178 = vmatpush.msra.mxu0 %v1124
    %1179 = vmatpush.msra.mxu0 %v1123
    %1180 = vmatpush.msra.mxu0 %v1122
    %1181 = vmatmul.f32.gmra.mxu0 %v1103
    %v1182 = vpop.f32.mrf.mxu0
    %v1183 = vadd.f32 %v1160, %v1182
    %1184 = vmatmul.f32.gmra.mxu0 %v1105
    %v1185 = vpop.f32.mrf.mxu0
    %v1186 = vadd.f32 %v1163, %v1185
    %1187 = vdwg.mxu0
    %v1188 = vadd.f32 %v970, %v1183
    %v1189 = vadd.f32 %v971, %v1186
    %1190 = vst.msk [vmem:[#allocation11] sm:$0xff] %vm121, %v1188
    %1191 = vst.msk [vmem:[#allocation11 + $0x8] sm:$0xff] %vm121, %v1189
    // Predicated region
    $region74: #{tpu_custom_call.1} parent=1 // pred_check
      _
    $region75: #{tpu_custom_call.1} parent=1 // pred_check_branch
      %1193 = sbr.rel (0) target = $region77
    $region76: #{tpu_custom_call.1} parent=1 // pred_region
      %1195 = vsyncadd [#allocation4], 0
      %s1196 = sshll.u32 [#allocation11], 4
      %s1197 = int_to_ptr.vmem [resolvable:$true] %s1196
      %s1198 = sshll.u32 %s13, 4
      %s1199 = int_to_ptr.hbm [resolvable:$true] %s1198
      %1204 = dma.vmem_to_hbm [thread:$0]  %s1197, 256, %s1199, [#allocation4], 128, 128, 8
    $region77: #{tpu_custom_call.1} parent=1 // pred_fallthru
      _
    // Predicated region
    $region78: #{tpu_custom_call.1} parent=1 // pred_check
      _
    $region79: #{tpu_custom_call.1} parent=1 // pred_check_branch
      %1206 = sbr.rel (0) target = $region81
    $region80: #{tpu_custom_call.1} parent=1 // pred_region
      %1208 = dma.done [#allocation4], 256
    $region81: #{tpu_custom_call.1} parent=1 // pred_fallthru
      _
    %1209 = vsyncpa [#allocation3], 1
    %1210 = vsyncpa [#allocation6], 1
    %1211 = vsyncpa [#allocation9], 1
    %1212 = vsyncpa [#allocation4], 1

</llo_original>
